<compile_context>
chip_gen: v5e
topology: v5e:2x2
jax: 0.10.0
libtpu: 0.0.40
codegen_flags: <defaults>
</compile_context>

<pallas_src>
import functools

import jax
import jax.numpy as jnp
from jax.experimental import pallas as pl
from jax.experimental.pallas import tpu as pltpu

H_PAD = 128   # hidden lanes (lane-dense for the MXU)
A_PAD = 128   # action lanes for the fc2 matmul / softmax (output itself is unpadded)


def policy_net_kernel(x_ref, w1_ref, bias_ref, w2_ref, o_ref, *, action_dim):
    # Per-tile cast of x to the MXU compute dtype (cheap VPU work, hidden under DMA).
    x = x_ref[...].astype(w1_ref.dtype)

    # fc1 + ReLU: bf16 MXU matmul with f32 accumulation; elementwise stays f32
    # (v5e VPU has no bf16 path, f32 elementwise is the fast path there).
    bias = bias_ref[...]                                   # (2, 128) f32, VMEM-resident
    h = jnp.dot(x, w1_ref[...], preferred_element_type=jnp.float32)
    h = jnp.maximum(h + bias[0:1, :], 0.0)                 # (tm, 128) f32

    # fc2: pad action lanes of bias row 1 carry -1e30, so padded logits vanish
    # from the softmax (exp underflows to exactly 0) -- no iota/where needed.
    logits = jnp.dot(h.astype(w2_ref.dtype), w2_ref[...],
                     preferred_element_type=jnp.float32) + bias[1:2, :]

    # Numerically stable softmax over the action (lane) axis == PyTorch dim=1.
    m = jnp.max(logits, axis=-1, keepdims=True)
    e = jnp.exp(logits - m)
    denom = jnp.sum(e, axis=-1, keepdims=True)
    probs = e / denom                                      # exact normalization

    # Store only the real action lanes; masked vst on 4 lanes is negligible here.
    o_ref[...] = probs[:, :action_dim].astype(o_ref.dtype)


def _round_up(n, m):
    return ((n + m - 1) // m) * m


def prepare_params(w1, b1, w2, b2, *, compute_dtype=jnp.bfloat16):
    """One-time prep: lane-dense zero-padded weights (pad contributions are exactly
    zero) and a packed [2, 128] bias with the softmax mask baked into row 1."""
    S, H = w1.shape
    H2, A = w2.shape
    assert H == H2 and H <= H_PAD and A <= A_PAD
    assert H_PAD == A_PAD, "packed bias rows share the 128-lane width"

    w1p = jnp.zeros((S, H_PAD), compute_dtype).at[:, :H].set(w1.astype(compute_dtype))
    w2p = jnp.zeros((H_PAD, A_PAD), compute_dtype).at[:H, :A].set(w2.astype(compute_dtype))

    bias = jnp.zeros((2, A_PAD), jnp.float32)
    bias = bias.at[0, :H].set(b1.reshape(-1).astype(jnp.float32))        # fc1 bias
    bias = bias.at[1, :].set(jnp.full((A_PAD,), -1e30, jnp.float32))     # softmax mask
    bias = bias.at[1, :A].set(b2.reshape(-1).astype(jnp.float32))        # fc2 bias
    return w1p, bias, w2p


def policy_net_forward(x, w1p, bias, w2p, *, action_dim, block_m=512):
    """x: [B, state_dim] f32 (cast happens in-kernel); padded params from
    prepare_params.  Returns [B, action_dim] f32 probabilities."""
    B, S = x.shape
    A = action_dim

    # Batch tiling: big tiles amortize per-step overhead; keep >=2 steps at B=1024
    # so both v7x TensorCores are used via the "parallel" grid axis.
    tm = _round_up(min(block_m, _round_up(B, 8)), 8)
    Bp = _round_up(B, tm)
    x_p = x if Bp == B else jnp.pad(x, ((0, Bp - B), (0, 0)))
    grid = (Bp // tm,)

    out_bytes = Bp * A * 4
    in_bytes = (x_p.size * x_p.dtype.itemsize
                + w1p.size * w1p.dtype.itemsize
                + w2p.size * w2p.dtype.itemsize
                + bias.size * bias.dtype.itemsize)

    out = pl.pallas_call(
        functools.partial(policy_net_kernel, action_dim=A),
        out_shape=jax.ShapeDtypeStruct((Bp, A), jnp.float32),
        grid=grid,
        in_specs=[
            pl.BlockSpec((tm, S), lambda i: (i, 0)),          # x: tiled over batch
            pl.BlockSpec((S, H_PAD), lambda i: (0, 0)),       # w1: VMEM-resident
            pl.BlockSpec((2, A_PAD), lambda i: (0, 0)),       # packed biases: resident
            pl.BlockSpec((H_PAD, A_PAD), lambda i: (0, 0)),   # w2: VMEM-resident
        ],
        out_specs=pl.BlockSpec((tm, A), lambda i: (i, 0)),    # exact-width output
        compiler_params=pltpu.CompilerParams(
            dimension_semantics=("parallel",),                # megacore split on v7x
            vmem_limit_bytes=32 * 1024 * 1024,                # far below v7x's 64 MiB
        ),
        cost_estimate=pl.CostEstimate(
            flops=2 * Bp * (S * H_PAD + H_PAD * A_PAD),
            transcendentals=Bp * A_PAD,
            bytes_accessed=in_bytes + out_bytes,
        ),
    )(x_p, w1p, bias, w2p)

    return out if Bp == B else out[:B]


def init_params(key, state_dim, hidden_dim, action_dim):
    """Mimic nn.Linear default init U(-1/sqrt(fan_in), 1/sqrt(fan_in));
    weights stored pre-transposed as [in, out], biases 1-D."""
    k1, k2, k3, k4 = jax.random.split(key, 4)
    bound1 = 1.0 / jnp.sqrt(state_dim)
    bound2 = 1.0 / jnp.sqrt(hidden_dim)
    w1 = jax.random.uniform(k1, (state_dim, hidden_dim), jnp.float32, -bound1, bound1)
    b1 = jax.random.uniform(k2, (hidden_dim,), jnp.float32, -bound1, bound1)
    w2 = jax.random.uniform(k3, (hidden_dim, action_dim), jnp.float32, -bound2, bound2)
    b2 = jax.random.uniform(k4, (action_dim,), jnp.float32, -bound2, bound2)
    return w1, b1, w2, b2


if __name__ == "__main__":
    # Batch many policy evaluations into one call (launch/DMA overhead amortized).
    B, S, H, A = 1024, 16, 32, 4

    key = jax.random.PRNGKey(0)
    kx, kp = jax.random.split(key)
    x = jax.random.normal(kx, (B, S), dtype=jnp.float32)
    w1, b1, w2, b2 = init_params(kp, S, H, A)

    # One-time parameter prep (padding / casting / bias packing) outside the hot path.
    w1p, bias, w2p = jax.block_until_ready(prepare_params(w1, b1, w2, b2))

    fwd = jax.jit(functools.partial(policy_net_forward, action_dim=A, block_m=512))
    out = jax.block_until_ready(fwd(x, w1p, bias, w2p))

    # Pure-JAX f32 reference (tolerances cover the bf16 MXU operands).
    h_ref = jnp.maximum(x @ w1 + b1, 0.0)
    ref = jax.nn.softmax(h_ref @ w2 + b2, axis=1)

    assert out.shape == (B, A)
    assert jnp.allclose(out, ref, atol=2e-2, rtol=2e-2)
    assert jnp.allclose(jnp.sum(out, axis=1), 1.0, atol=1e-5)   # exact normalization

    print("KERNEL_OK")
</pallas_src>

<mosaic_0001>
module attributes {stable_mosaic.version = 11 : i64} {
  func.func @policy_net_kernel(%arg0: i32, %arg1: memref<512x16xf32, #tpu.memory_space<vmem>>, %arg2: memref<16x128xbf16, #tpu.memory_space<vmem>>, %arg3: memref<2x128xf32, #tpu.memory_space<vmem>>, %arg4: memref<128x128xbf16, #tpu.memory_space<vmem>>, %arg5: memref<512x4xf32, #tpu.memory_space<vmem>>) attributes {dimension_semantics = [#tpu.dimension_semantics<parallel>], iteration_bounds = array<i64: 2>, scalar_prefetch = 0 : i64, scratch_operands = 0 : i64, tpu.core_type = #tpu.core_type<tc>, window_params = [{transform_indices = @transform_0, window_bounds = array<i64: 512, 16>}, {pipeline_mode = #tpu.pipeline_mode<synchronous>, transform_indices = @transform_1, window_bounds = array<i64: 16, 128>}, {pipeline_mode = #tpu.pipeline_mode<synchronous>, transform_indices = @transform_2, window_bounds = array<i64: 2, 128>}, {pipeline_mode = #tpu.pipeline_mode<synchronous>, transform_indices = @transform_3, window_bounds = array<i64: 128, 128>}, {transform_indices = @transform_4, window_bounds = array<i64: 512, 4>}]} {
    %c0 = arith.constant 0 : index
    %c0_0 = arith.constant 0 : index
    %0 = vector.load %arg1[%c0, %c0_0] : memref<512x16xf32, #tpu.memory_space<vmem>>, vector<512x16xf32>
    %1 = arith.truncf %0 : vector<512x16xf32> to vector<512x16xbf16>
    %c0_1 = arith.constant 0 : index
    %c0_2 = arith.constant 0 : index
    %2 = vector.load %arg3[%c0_1, %c0_2] : memref<2x128xf32, #tpu.memory_space<vmem>>, vector<2x128xf32>
    %c0_3 = arith.constant 0 : index
    %c0_4 = arith.constant 0 : index
    %3 = vector.load %arg2[%c0_3, %c0_4] : memref<16x128xbf16, #tpu.memory_space<vmem>>, vector<16x128xbf16>
    %cst = arith.constant dense<0.000000e+00> : vector<512x128xf32>
    %4 = tpu.matmul %1, %3, %cst {dimension_numbers = #tpu.dot_dimension_numbers<[1], [0], [0], [1], [0, 0, 1, 1], [], []>} : vector<512x16xbf16>, vector<16x128xbf16>, vector<512x128xf32> -> vector<512x128xf32>
    %5 = vector.extract_strided_slice %2 {offsets = [0, 0], sizes = [1, 128], strides = [1, 1]} : vector<2x128xf32> to vector<1x128xf32>
    %6 = vector.broadcast %5 : vector<1x128xf32> to vector<512x128xf32>
    %7 = arith.addf %4, %6 : vector<512x128xf32>
    %cst_5 = arith.constant 0.000000e+00 : f32
    %8 = vector.broadcast %cst_5 : f32 to vector<512x128xf32>
    %9 = arith.maximumf %7, %8 : vector<512x128xf32>
    %10 = arith.truncf %9 : vector<512x128xf32> to vector<512x128xbf16>
    %c0_6 = arith.constant 0 : index
    %c0_7 = arith.constant 0 : index
    %11 = vector.load %arg4[%c0_6, %c0_7] : memref<128x128xbf16, #tpu.memory_space<vmem>>, vector<128x128xbf16>
    %cst_8 = arith.constant dense<0.000000e+00> : vector<512x128xf32>
    %12 = tpu.matmul %10, %11, %cst_8 {dimension_numbers = #tpu.dot_dimension_numbers<[1], [0], [0], [1], [0, 0, 1, 1], [], []>} : vector<512x128xbf16>, vector<128x128xbf16>, vector<512x128xf32> -> vector<512x128xf32>
    %13 = vector.extract_strided_slice %2 {offsets = [1, 0], sizes = [1, 128], strides = [1, 1]} : vector<2x128xf32> to vector<1x128xf32>
    %14 = vector.broadcast %13 : vector<1x128xf32> to vector<512x128xf32>
    %15 = arith.addf %12, %14 : vector<512x128xf32>
    %cst_9 = arith.constant dense<0xFF800000> : vector<512xf32>
    %16 = vector.multi_reduction <maximumf>, %15, %cst_9 [1] : vector<512x128xf32> to vector<512xf32>
    %17 = vector.shape_cast %16 : vector<512xf32> to vector<512x1xf32>
    %18 = vector.broadcast %17 : vector<512x1xf32> to vector<512x128xf32>
    %19 = arith.subf %15, %18 : vector<512x128xf32>
    %20 = math.exp %19 : vector<512x128xf32>
    %cst_10 = arith.constant dense<0.000000e+00> : vector<512xf32>
    %21 = vector.multi_reduction <add>, %20, %cst_10 [1] : vector<512x128xf32> to vector<512xf32>
    %22 = vector.shape_cast %21 : vector<512xf32> to vector<512x1xf32>
    %23 = vector.broadcast %22 : vector<512x1xf32> to vector<512x128xf32>
    %24 = arith.divf %20, %23 : vector<512x128xf32>
    %25 = vector.extract_strided_slice %24 {offsets = [0, 0], sizes = [512, 4], strides = [1, 1]} : vector<512x128xf32> to vector<512x4xf32>
    %c0_11 = arith.constant 0 : index
    %c0_12 = arith.constant 0 : index
    %26 = vector.load %arg5[%c0_11, %c0_12] : memref<512x4xf32, #tpu.memory_space<vmem>>, vector<512x4xf32>
    tpu.vector_store %arg5[%c0_11, %c0_12], %25 {strides = array<i32>} : memref<512x4xf32, #tpu.memory_space<vmem>>, vector<512x4xf32>,
    return
  }
  func.func @transform_0(%arg0: i32) -> (i32, i32) {
    %c0_i32 = arith.constant 0 : i32
    %c0_i32_0 = arith.constant 0 : i32
    return %arg0, %c0_i32 : i32, i32
  }
  func.func @transform_1(%arg0: i32) -> (i32, i32) {
    %c0_i32 = arith.constant 0 : i32
    %c0_i32_0 = arith.constant 0 : i32
    %c0_i32_1 = arith.constant 0 : i32
    return %c0_i32, %c0_i32_0 : i32, i32
  }
  func.func @transform_2(%arg0: i32) -> (i32, i32) {
    %c0_i32 = arith.constant 0 : i32
    %c0_i32_0 = arith.constant 0 : i32
    %c0_i32_1 = arith.constant 0 : i32
    return %c0_i32, %c0_i32_0 : i32, i32
  }
  func.func @transform_3(%arg0: i32) -> (i32, i32) {
    %c0_i32 = arith.constant 0 : i32
    %c0_i32_0 = arith.constant 0 : i32
    %c0_i32_1 = arith.constant 0 : i32
    return %c0_i32, %c0_i32_0 : i32, i32
  }
  func.func @transform_4(%arg0: i32) -> (i32, i32) {
    %c0_i32 = arith.constant 0 : i32
    %c0_i32_0 = arith.constant 0 : i32
    return %arg0, %c0_i32 : i32, i32
  }
}

</mosaic_0001>

<llo_original>
// kernel: policy_net_forward.1
$region0: #{policy_net_forward.1}
  #allocation0 [shape = 'u32[]', space=smem, size = 0x4, offset = 0x4, fixed_abs, tag = 'smem constant byte address 0x4 - core index']
  #allocation1 [shape = 'u32[72,128]{1,0:T(1,128)}', space=vmem, size = 0x9000, scoped, tag = 'internal scratch']
  %s0 = inlined_call_operand.vmem [shape: f32[1024,16], index: 0, kind: input, shape index: {}]
  %s1 = inlined_call_operand.vmem [shape: bf16[16,128], index: 1, kind: input, shape index: {}]
  %s2 = inlined_call_operand.vmem [shape: f32[2,128], index: 2, kind: input, shape index: {}]
  %s3 = inlined_call_operand.vmem [shape: bf16[128,128], index: 3, kind: input, shape index: {}]
  %s4 = inlined_call_operand.vmem [shape: f32[1024,4], index: 4, kind: output, shape index: {}]
  %s5 = sld [smem:[#allocation0]]
  $region49: #{policy_net_forward.1} parent=0
    _
  %s7 = ssub.s32 1, %s5
  %s8 = scalar_select 0, %s7, %s5
  loop: start=0, step=1, limit=4
  $region2: #{policy_net_forward.1} parent=0 // loop_pre_header
    _
  $region3: #{policy_net_forward.1} parent=0 // loop_header
    %s10 = sphi 0, %s14
    %p11 = scmp.ge.s32.totalorder %s10, 4
    %s20 = sphi 0, %s22
    %s23 = sphi 0, %s20
    %s24 = sphi 0, %s23
    %s40 = sphi 0, %s24
    %s44 = sphi 0, %s44
    %s46 = sphi 0, %s44
    %s47 = sphi 0, %s46
    %s61 = sphi 0, %s47
    %s65 = sphi 0, %s65
    %s67 = sphi 0, %s65
    %s68 = sphi 0, %s67
    %s82 = sphi 0, %s68
    %s86 = sphi 0, %s86
    %s88 = sphi 0, %s86
    %s89 = sphi 0, %s88
    %s103 = sphi 0, %s89
    %s109 = sphi 0, %s111
    %s112 = sphi 0, %s109
    %s113 = sphi 0, %s112
    %s129 = sphi 0, %s113
  $region4: #{policy_net_forward.1} parent=0 // loop_header_branch
    %13 = sbr.rel (%p11) target = $region8
  $region5: #{policy_net_forward.1} parent=0 // loop_body
    %s15 = ssub.s32 %s10, 1
    %s16 = ssub.s32 %s10, 2
    %s17 = sadd.s32 %s10, 1
    %s18 = ssub.s32 %s10, %s17
    %p19 = scmp.eq.s32.totalorder %s18, 0
    %s21 = sadd.s32 %s20, 1
    %s22 = scalar_select %p19, %s20, %s21
    %p25 = pneg %p19
    %p26 = scmp.eq.s32.totalorder %s10, 1
    %p27 = por %p25, %p26
    %p28 = scmp.ne.s32.totalorder %s20, %s23
    %p29 = scmp.eq.s32.totalorder %s10, 0
    %p30 = por %p28, %p29
    %p31 = scmp.ne.s32.totalorder %s20, %s23
    %p32 = scmp.eq.s32.totalorder %s15, 1
    %p33 = por %p31, %p32
    %p34 = scmp.ne.s32.totalorder %s23, %s24
    %p35 = scmp.eq.s32.totalorder %s15, 0
    %p36 = por %p34, %p35
    %p37 = scmp.ne.s32.totalorder %s23, %s24
    %p38 = scmp.eq.s32.totalorder %s16, 1
    %p39 = por %p37, %p38
    %p41 = scmp.ne.s32.totalorder %s24, %s40
    %p42 = scmp.eq.s32.totalorder %s16, 0
    %p43 = por %p41, %p42
    %s45 = sadd.s32 %s44, 1
    %p48 = scmp.eq.s32.totalorder %s10, 1
    %p49 = scmp.ne.s32.totalorder %s44, %s46
    %p50 = scmp.eq.s32.totalorder %s10, 0
    %p51 = por %p49, %p50
    %p52 = scmp.ne.s32.totalorder %s44, %s46
    %p53 = scmp.eq.s32.totalorder %s15, 1
    %p54 = por %p52, %p53
    %p55 = scmp.ne.s32.totalorder %s46, %s47
    %p56 = scmp.eq.s32.totalorder %s15, 0
    %p57 = por %p55, %p56
    %p58 = scmp.ne.s32.totalorder %s46, %s47
    %p59 = scmp.eq.s32.totalorder %s16, 1
    %p60 = por %p58, %p59
    %p62 = scmp.ne.s32.totalorder %s47, %s61
    %p63 = scmp.eq.s32.totalorder %s16, 0
    %p64 = por %p62, %p63
    %s66 = sadd.s32 %s65, 1
    %p69 = scmp.eq.s32.totalorder %s10, 1
    %p70 = scmp.ne.s32.totalorder %s65, %s67
    %p71 = scmp.eq.s32.totalorder %s10, 0
    %p72 = por %p70, %p71
    %p73 = scmp.ne.s32.totalorder %s65, %s67
    %p74 = scmp.eq.s32.totalorder %s15, 1
    %p75 = por %p73, %p74
    %p76 = scmp.ne.s32.totalorder %s67, %s68
    %p77 = scmp.eq.s32.totalorder %s15, 0
    %p78 = por %p76, %p77
    %p79 = scmp.ne.s32.totalorder %s67, %s68
    %p80 = scmp.eq.s32.totalorder %s16, 1
    %p81 = por %p79, %p80
    %p83 = scmp.ne.s32.totalorder %s68, %s82
    %p84 = scmp.eq.s32.totalorder %s16, 0
    %p85 = por %p83, %p84
    %s87 = sadd.s32 %s86, 1
    %p90 = scmp.eq.s32.totalorder %s10, 1
    %p91 = scmp.ne.s32.totalorder %s86, %s88
    %p92 = scmp.eq.s32.totalorder %s10, 0
    %p93 = por %p91, %p92
    %p94 = scmp.ne.s32.totalorder %s86, %s88
    %p95 = scmp.eq.s32.totalorder %s15, 1
    %p96 = por %p94, %p95
    %p97 = scmp.ne.s32.totalorder %s88, %s89
    %p98 = scmp.eq.s32.totalorder %s15, 0
    %p99 = por %p97, %p98
    %p100 = scmp.ne.s32.totalorder %s88, %s89
    %p101 = scmp.eq.s32.totalorder %s16, 1
    %p102 = por %p100, %p101
    %p104 = scmp.ne.s32.totalorder %s89, %s103
    %p105 = scmp.eq.s32.totalorder %s16, 0
    %p106 = por %p104, %p105
    %s107 = ssub.s32 %s10, %s17
    %p108 = scmp.eq.s32.totalorder %s107, 0
    %s110 = sadd.s32 %s109, 1
    %s111 = scalar_select %p108, %s109, %s110
    %p114 = pneg %p108
    %p115 = scmp.eq.s32.totalorder %s10, 1
    %p116 = por %p114, %p115
    %p117 = scmp.ne.s32.totalorder %s109, %s112
    %p118 = scmp.eq.s32.totalorder %s10, 0
    %p119 = por %p117, %p118
    %p120 = scmp.ne.s32.totalorder %s109, %s112
    %p121 = scmp.eq.s32.totalorder %s15, 1
    %p122 = por %p120, %p121
    %p123 = scmp.ne.s32.totalorder %s112, %s113
    %p124 = scmp.eq.s32.totalorder %s15, 0
    %p125 = por %p123, %p124
    %p126 = scmp.ne.s32.totalorder %s112, %s113
    %p127 = scmp.eq.s32.totalorder %s16, 1
    %p128 = por %p126, %p127
    %p130 = scmp.ne.s32.totalorder %s113, %s129
    %p131 = scmp.eq.s32.totalorder %s16, 0
    %p132 = por %p130, %p131
    %p133 = scmp.le.s32.totalorder 1, %s10
    %p134 = scmp.lt.s32.totalorder %s10, 3
    %p135 = pnand %p133, %p134
    %p136 = pneg %p135
    // Predicated region
    $region9: #{policy_net_forward.1} parent=5 // pred_check
      _
    $region10: #{policy_net_forward.1} parent=5 // pred_check_branch
      %138 = sbr.rel (%p135) target = $region12
    $region11: #{policy_net_forward.1} parent=5 // pred_region
      %s139 = ssub.s32 %s10, 1
      // Predicated region
      $region13: #{policy_net_forward.1} parent=11 // pred_check
        %p140 = pneg %p57
      $region14: #{policy_net_forward.1} parent=11 // pred_check_branch
        %142 = sbr.rel (%p140) target = $region16
      $region15: #{policy_net_forward.1} parent=11 // pred_region
        _
      $region16: #{policy_net_forward.1} parent=11 // pred_fallthru
        _
      // Predicated region
      $region17: #{policy_net_forward.1} parent=11 // pred_check
        %p143 = pneg %p78
      $region18: #{policy_net_forward.1} parent=11 // pred_check_branch
        %145 = sbr.rel (%p143) target = $region20
      $region19: #{policy_net_forward.1} parent=11 // pred_region
        _
      $region20: #{policy_net_forward.1} parent=11 // pred_fallthru
        _
      // Predicated region
      $region21: #{policy_net_forward.1} parent=11 // pred_check
        %p146 = pneg %p99
      $region22: #{policy_net_forward.1} parent=11 // pred_check_branch
        %148 = sbr.rel (%p146) target = $region24
      $region23: #{policy_net_forward.1} parent=11 // pred_region
        _
      $region24: #{policy_net_forward.1} parent=11 // pred_fallthru
        _
    $region12: #{policy_net_forward.1} parent=5 // pred_fallthru
      _
    %p149 = scmp.lt.s32.totalorder %s10, 2
    // Predicated region
    $region25: #{policy_net_forward.1} parent=5 // pred_check
      %p150 = pneg %p149
    $region26: #{policy_net_forward.1} parent=5 // pred_check_branch
      %152 = sbr.rel (%p150) target = $region28
    $region27: #{policy_net_forward.1} parent=5 // pred_region
      // Predicated region
      $region29: #{policy_net_forward.1} parent=27 // pred_check
        %p153 = pneg %p30
      $region30: #{policy_net_forward.1} parent=27 // pred_check_branch
        %155 = sbr.rel (%p153) target = $region32
      $region31: #{policy_net_forward.1} parent=27 // pred_region
        %s156 = smul.u32 64, %s10
        %p157 = scmp.lt.s32.totalorder %s156, 127
        %s158 = scalar_select %p157, %s156, 127
        %s159 = smul.addr %s158, 8
        %s160 = scalar_lea.vmem %s0, %s159
        %s161 = smul.u32 64, %s10
      $region32: #{policy_net_forward.1} parent=27 // pred_fallthru
        _
    $region28: #{policy_net_forward.1} parent=5 // pred_fallthru
      _
    %p162 = scmp.le.s32.totalorder 1, %s10
    %p163 = scmp.lt.s32.totalorder %s10, 3
    %p164 = pnand %p162, %p163
    %p165 = pneg %p164
    // Predicated region
    $region33: #{policy_net_forward.1} parent=5 // pred_check
      _
    $region34: #{policy_net_forward.1} parent=5 // pred_check_branch
      %167 = sbr.rel (%p164) target = $region36
    $region35: #{policy_net_forward.1} parent=5 // pred_region
      %s168 = ssub.s32 %s10, 1
      %s169 = smul.u32 64, %s15
      %p170 = scmp.lt.s32.totalorder %s169, 127
      %s171 = scalar_select %p170, %s169, 127
      %s172 = smul.addr %s171, 8
      %s173 = scalar_lea.vmem %s0, %s172
      %p174 = pneg %p36
      %p175 = pneg %p33
      %p176 = pneg %p57
      %p177 = pneg %p54
      %p178 = pneg %p78
      %p179 = pneg %p75
      %p180 = pneg %p99
      %p181 = pneg %p96
      %p182 = pneg %p125
      %p183 = pneg %p122
      %s184 = smul.u32 64, %s15
      %p185 = scmp.lt.s32.totalorder %s184, 127
      %s186 = scalar_select %p185, %s184, 127
      %s187 = smul.addr %s186, 8
      %s188 = scalar_lea.vmem %s4, %s187
      %s189 = smul.u32 64, %s15
      %p190 = scmp.lt.s32.totalorder %s189, 127
      %s191 = scalar_select %p190, %s189, 127
      %s192 = smul.addr %s191, 8
      %s193 = scalar_lea.vmem %s0, %s192
      %s194 = smul.u32 64, %s15
      %s195 = smul.u32 64, %s15
      %p196 = scmp.lt.s32.totalorder %s195, 127
      %s197 = scalar_select %p196, %s195, 127
      %s198 = smul.addr %s197, 8
      %s199 = scalar_lea.vmem %s4, %s198
      %s200 = smul.u32 64, %s15
      %v202 = vld [vmem:[%s193] sm:$0xff]
      %v203 = vld [vmem:[%s193 + $0x8] sm:$0xff]
      %v204 = vld [vmem:[%s193 + $0x10] sm:$0xff]
      %v205 = vld [vmem:[%s193 + $0x18] sm:$0xff]
      %v206 = vld [vmem:[%s193 + $0x20] sm:$0xff]
      %v207 = vld [vmem:[%s193 + $0x28] sm:$0xff]
      %v208 = vld [vmem:[%s193 + $0x30] sm:$0xff]
      %v209 = vld [vmem:[%s193 + $0x38] sm:$0xff]
      %v210 = vld [vmem:[%s193 + $0x40] sm:$0xff]
      %v211 = vld [vmem:[%s193 + $0x48] sm:$0xff]
      %v212 = vld [vmem:[%s193 + $0x50] sm:$0xff]
      %v213 = vld [vmem:[%s193 + $0x58] sm:$0xff]
      %v214 = vld [vmem:[%s193 + $0x60] sm:$0xff]
      %v215 = vld [vmem:[%s193 + $0x68] sm:$0xff]
      %v216 = vld [vmem:[%s193 + $0x70] sm:$0xff]
      %v217 = vld [vmem:[%s193 + $0x78] sm:$0xff]
      %v218 = vld [vmem:[%s193 + $0x80] sm:$0xff]
      %v219 = vld [vmem:[%s193 + $0x88] sm:$0xff]
      %v220 = vld [vmem:[%s193 + $0x90] sm:$0xff]
      %v221 = vld [vmem:[%s193 + $0x98] sm:$0xff]
      %v222 = vld [vmem:[%s193 + $0xa0] sm:$0xff]
      %v223 = vld [vmem:[%s193 + $0xa8] sm:$0xff]
      %v224 = vld [vmem:[%s193 + $0xb0] sm:$0xff]
      %v225 = vld [vmem:[%s193 + $0xb8] sm:$0xff]
      %v226 = vld [vmem:[%s193 + $0xc0] sm:$0xff]
      %v227 = vld [vmem:[%s193 + $0xc8] sm:$0xff]
      %v228 = vld [vmem:[%s193 + $0xd0] sm:$0xff]
      %v229 = vld [vmem:[%s193 + $0xd8] sm:$0xff]
      %v230 = vld [vmem:[%s193 + $0xe0] sm:$0xff]
      %v231 = vld [vmem:[%s193 + $0xe8] sm:$0xff]
      %v232 = vld [vmem:[%s193 + $0xf0] sm:$0xff]
      %v233 = vld [vmem:[%s193 + $0xf8] sm:$0xff]
      %v234 = vld [vmem:[%s193 + $0x100] sm:$0xff]
      %v235 = vld [vmem:[%s193 + $0x108] sm:$0xff]
      %v236 = vld [vmem:[%s193 + $0x110] sm:$0xff]
      %v237 = vld [vmem:[%s193 + $0x118] sm:$0xff]
      %v238 = vld [vmem:[%s193 + $0x120] sm:$0xff]
      %v239 = vld [vmem:[%s193 + $0x128] sm:$0xff]
      %v240 = vld [vmem:[%s193 + $0x130] sm:$0xff]
      %v241 = vld [vmem:[%s193 + $0x138] sm:$0xff]
      %v242 = vld [vmem:[%s193 + $0x140] sm:$0xff]
      %v243 = vld [vmem:[%s193 + $0x148] sm:$0xff]
      %v244 = vld [vmem:[%s193 + $0x150] sm:$0xff]
      %v245 = vld [vmem:[%s193 + $0x158] sm:$0xff]
      %v246 = vld [vmem:[%s193 + $0x160] sm:$0xff]
      %v247 = vld [vmem:[%s193 + $0x168] sm:$0xff]
      %v248 = vld [vmem:[%s193 + $0x170] sm:$0xff]
      %v249 = vld [vmem:[%s193 + $0x178] sm:$0xff]
      %v250 = vld [vmem:[%s193 + $0x180] sm:$0xff]
      %v251 = vld [vmem:[%s193 + $0x188] sm:$0xff]
      %v252 = vld [vmem:[%s193 + $0x190] sm:$0xff]
      %v253 = vld [vmem:[%s193 + $0x198] sm:$0xff]
      %v254 = vld [vmem:[%s193 + $0x1a0] sm:$0xff]
      %v255 = vld [vmem:[%s193 + $0x1a8] sm:$0xff]
      %v256 = vld [vmem:[%s193 + $0x1b0] sm:$0xff]
      %v257 = vld [vmem:[%s193 + $0x1b8] sm:$0xff]
      %v258 = vld [vmem:[%s193 + $0x1c0] sm:$0xff]
      %v259 = vld [vmem:[%s193 + $0x1c8] sm:$0xff]
      %v260 = vld [vmem:[%s193 + $0x1d0] sm:$0xff]
      %v261 = vld [vmem:[%s193 + $0x1d8] sm:$0xff]
      %v262 = vld [vmem:[%s193 + $0x1e0] sm:$0xff]
      %v263 = vld [vmem:[%s193 + $0x1e8] sm:$0xff]
      %v264 = vld [vmem:[%s193 + $0x1f0] sm:$0xff]
      %v265 = vld [vmem:[%s193 + $0x1f8] sm:$0xff]
      %v266 = vpack.c.bf16 %v203, %v202
      %v267 = vpack.c.bf16 %v205, %v204
      %v268 = vpack.c.bf16 %v207, %v206
      %v269 = vpack.c.bf16 %v209, %v208
      %v270 = vpack.c.bf16 %v211, %v210
      %v271 = vpack.c.bf16 %v213, %v212
      %v272 = vpack.c.bf16 %v215, %v214
      %v273 = vpack.c.bf16 %v217, %v216
      %v274 = vpack.c.bf16 %v219, %v218
      %v275 = vpack.c.bf16 %v221, %v220
      %v276 = vpack.c.bf16 %v223, %v222
      %v277 = vpack.c.bf16 %v225, %v224
      %v278 = vpack.c.bf16 %v227, %v226
      %v279 = vpack.c.bf16 %v229, %v228
      %v280 = vpack.c.bf16 %v231, %v230
      %v281 = vpack.c.bf16 %v233, %v232
      %v282 = vpack.c.bf16 %v235, %v234
      %v283 = vpack.c.bf16 %v237, %v236
      %v284 = vpack.c.bf16 %v239, %v238
      %v285 = vpack.c.bf16 %v241, %v240
      %v286 = vpack.c.bf16 %v243, %v242
      %v287 = vpack.c.bf16 %v245, %v244
      %v288 = vpack.c.bf16 %v247, %v246
      %v289 = vpack.c.bf16 %v249, %v248
      %v290 = vpack.c.bf16 %v251, %v250
      %v291 = vpack.c.bf16 %v253, %v252
      %v292 = vpack.c.bf16 %v255, %v254
      %v293 = vpack.c.bf16 %v257, %v256
      %v294 = vpack.c.bf16 %v259, %v258
      %v295 = vpack.c.bf16 %v261, %v260
      %v296 = vpack.c.bf16 %v263, %v262
      %v297 = vpack.c.bf16 %v265, %v264
      %v298 = vld [vmem:[%s2] sm:$0x3]
      %v299 = vld [vmem:[%s1] sm:$0xf]
      %v300 = vld [vmem:[%s1 + $0x4] sm:$0xf]
      %v301 = vperm.slane %v298, 0
      %v304 = vunpack.c.l.b16 %v299
      %v305 = vunpack.c.l.b16 %v300
      %v306 = vpack.c.b16 %v305, %v304
      %vm308 = vcmask 130048
      %v310 = vsel %vm308, %v266, 0
      %v313 = vsel %vm308, %v267, 0
      %v316 = vsel %vm308, %v268, 0
      %v319 = vsel %vm308, %v269, 0
      %v322 = vsel %vm308, %v270, 0
      %v325 = vsel %vm308, %v271, 0
      %v328 = vsel %vm308, %v272, 0
      %v331 = vsel %vm308, %v273, 0
      %v334 = vsel %vm308, %v274, 0
      %v337 = vsel %vm308, %v275, 0
      %v340 = vsel %vm308, %v276, 0
      %v343 = vsel %vm308, %v277, 0
      %v346 = vsel %vm308, %v278, 0
      %v349 = vsel %vm308, %v279, 0
      %v352 = vsel %vm308, %v280, 0
      %v355 = vsel %vm308, %v281, 0
      %v358 = vsel %vm308, %v282, 0
      %v361 = vsel %vm308, %v283, 0
      %v364 = vsel %vm308, %v284, 0
      %v367 = vsel %vm308, %v285, 0
      %v370 = vsel %vm308, %v286, 0
      %v373 = vsel %vm308, %v287, 0
      %v376 = vsel %vm308, %v288, 0
      %v379 = vsel %vm308, %v289, 0
      %v382 = vsel %vm308, %v290, 0
      %v385 = vsel %vm308, %v291, 0
      %v388 = vsel %vm308, %v292, 0
      %v391 = vsel %vm308, %v293, 0
      %v394 = vsel %vm308, %v294, 0
      %v397 = vsel %vm308, %v295, 0
      %v400 = vsel %vm308, %v296, 0
      %v403 = vsel %vm308, %v297, 0
      %405 = vmatpush.bf16.msra.mxu0 0
      %406 = vmatpush.bf16.msra.mxu0 0
      %407 = vmatpush.bf16.msra.mxu0 0
      %408 = vmatpush.bf16.msra.mxu0 0
      %409 = vmatpush.bf16.msra.mxu0 0
      %410 = vmatpush.bf16.msra.mxu0 0
      %411 = vmatpush.bf16.msra.mxu0 0
      %412 = vmatpush.bf16.msra.mxu0 %v306
      %413 = vmatmul.bf16.gmra.mxu0 %v310
      %v414 = vpop.f32.mrf.mxu0
      %v415 = vadd.f32 %v301, %v414
      %v416 = vpop.f32.mrf.mxu0
      %v417 = vadd.f32 %v301, %v416
      %418 = vmatmul.bf16.gmra.mxu0 %v313
      %v419 = vpop.f32.mrf.mxu0
      %v420 = vadd.f32 %v301, %v419
      %v421 = vpop.f32.mrf.mxu0
      %v422 = vadd.f32 %v301, %v421
      %423 = vmatmul.bf16.gmra.mxu0 %v316
      %v424 = vpop.f32.mrf.mxu0
      %v425 = vadd.f32 %v301, %v424
      %v426 = vpop.f32.mrf.mxu0
      %v427 = vadd.f32 %v301, %v426
      %428 = vmatmul.bf16.gmra.mxu0 %v319
      %v429 = vpop.f32.mrf.mxu0
      %v430 = vadd.f32 %v301, %v429
      %v431 = vpop.f32.mrf.mxu0
      %v432 = vadd.f32 %v301, %v431
      %433 = vmatmul.bf16.gmra.mxu0 %v322
      %v434 = vpop.f32.mrf.mxu0
      %v435 = vadd.f32 %v301, %v434
      %v436 = vpop.f32.mrf.mxu0
      %v437 = vadd.f32 %v301, %v436
      %438 = vmatmul.bf16.gmra.mxu0 %v325
      %v439 = vpop.f32.mrf.mxu0
      %v440 = vadd.f32 %v301, %v439
      %v441 = vpop.f32.mrf.mxu0
      %v442 = vadd.f32 %v301, %v441
      %443 = vmatmul.bf16.gmra.mxu0 %v328
      %v444 = vpop.f32.mrf.mxu0
      %v445 = vadd.f32 %v301, %v444
      %v446 = vpop.f32.mrf.mxu0
      %v447 = vadd.f32 %v301, %v446
      %448 = vmatmul.bf16.gmra.mxu0 %v331
      %v449 = vpop.f32.mrf.mxu0
      %v450 = vadd.f32 %v301, %v449
      %v451 = vpop.f32.mrf.mxu0
      %v452 = vadd.f32 %v301, %v451
      %453 = vmatmul.bf16.gmra.mxu0 %v334
      %v454 = vpop.f32.mrf.mxu0
      %v455 = vadd.f32 %v301, %v454
      %v456 = vpop.f32.mrf.mxu0
      %v457 = vadd.f32 %v301, %v456
      %458 = vmatmul.bf16.gmra.mxu0 %v337
      %v459 = vpop.f32.mrf.mxu0
      %v460 = vadd.f32 %v301, %v459
      %v461 = vpop.f32.mrf.mxu0
      %v462 = vadd.f32 %v301, %v461
      %463 = vmatmul.bf16.gmra.mxu0 %v340
      %v464 = vpop.f32.mrf.mxu0
      %v465 = vadd.f32 %v301, %v464
      %v466 = vpop.f32.mrf.mxu0
      %v467 = vadd.f32 %v301, %v466
      %468 = vmatmul.bf16.gmra.mxu0 %v343
      %v469 = vpop.f32.mrf.mxu0
      %v470 = vadd.f32 %v301, %v469
      %v471 = vpop.f32.mrf.mxu0
      %v472 = vadd.f32 %v301, %v471
      %473 = vmatmul.bf16.gmra.mxu0 %v346
      %v474 = vpop.f32.mrf.mxu0
      %v475 = vadd.f32 %v301, %v474
      %v476 = vpop.f32.mrf.mxu0
      %v477 = vadd.f32 %v301, %v476
      %478 = vmatmul.bf16.gmra.mxu0 %v349
      %v479 = vpop.f32.mrf.mxu0
      %v480 = vadd.f32 %v301, %v479
      %v481 = vpop.f32.mrf.mxu0
      %v482 = vadd.f32 %v301, %v481
      %483 = vmatmul.bf16.gmra.mxu0 %v352
      %v484 = vpop.f32.mrf.mxu0
      %v485 = vadd.f32 %v301, %v484
      %v486 = vpop.f32.mrf.mxu0
      %v487 = vadd.f32 %v301, %v486
      %488 = vmatmul.bf16.gmra.mxu0 %v355
      %v489 = vpop.f32.mrf.mxu0
      %v490 = vadd.f32 %v301, %v489
      %v491 = vpop.f32.mrf.mxu0
      %v492 = vadd.f32 %v301, %v491
      %493 = vmatmul.bf16.gmra.mxu0 %v358
      %v494 = vpop.f32.mrf.mxu0
      %v495 = vadd.f32 %v301, %v494
      %v496 = vpop.f32.mrf.mxu0
      %v497 = vadd.f32 %v301, %v496
      %498 = vmatmul.bf16.gmra.mxu0 %v361
      %v499 = vpop.f32.mrf.mxu0
      %v500 = vadd.f32 %v301, %v499
      %v501 = vpop.f32.mrf.mxu0
      %v502 = vadd.f32 %v301, %v501
      %503 = vmatmul.bf16.gmra.mxu0 %v364
      %v504 = vpop.f32.mrf.mxu0
      %v505 = vadd.f32 %v301, %v504
      %v506 = vpop.f32.mrf.mxu0
      %v507 = vadd.f32 %v301, %v506
      %508 = vmatmul.bf16.gmra.mxu0 %v367
      %v509 = vpop.f32.mrf.mxu0
      %v510 = vadd.f32 %v301, %v509
      %v511 = vpop.f32.mrf.mxu0
      %v512 = vadd.f32 %v301, %v511
      %513 = vmatmul.bf16.gmra.mxu0 %v370
      %v514 = vpop.f32.mrf.mxu0
      %v515 = vadd.f32 %v301, %v514
      %v516 = vpop.f32.mrf.mxu0
      %v517 = vadd.f32 %v301, %v516
      %518 = vmatmul.bf16.gmra.mxu0 %v373
      %v519 = vpop.f32.mrf.mxu0
      %v520 = vadd.f32 %v301, %v519
      %v521 = vpop.f32.mrf.mxu0
      %v522 = vadd.f32 %v301, %v521
      %523 = vmatmul.bf16.gmra.mxu0 %v376
      %v524 = vpop.f32.mrf.mxu0
      %v525 = vadd.f32 %v301, %v524
      %v526 = vpop.f32.mrf.mxu0
      %v527 = vadd.f32 %v301, %v526
      %528 = vmatmul.bf16.gmra.mxu0 %v379
      %v529 = vpop.f32.mrf.mxu0
      %v530 = vadd.f32 %v301, %v529
      %v531 = vpop.f32.mrf.mxu0
      %v532 = vadd.f32 %v301, %v531
      %533 = vmatmul.bf16.gmra.mxu0 %v382
      %v534 = vpop.f32.mrf.mxu0
      %v535 = vadd.f32 %v301, %v534
      %v536 = vpop.f32.mrf.mxu0
      %v537 = vadd.f32 %v301, %v536
      %538 = vmatmul.bf16.gmra.mxu0 %v385
      %v539 = vpop.f32.mrf.mxu0
      %v540 = vadd.f32 %v301, %v539
      %v541 = vpop.f32.mrf.mxu0
      %v542 = vadd.f32 %v301, %v541
      %543 = vmatmul.bf16.gmra.mxu0 %v388
      %v544 = vpop.f32.mrf.mxu0
      %v545 = vadd.f32 %v301, %v544
      %v546 = vpop.f32.mrf.mxu0
      %v547 = vadd.f32 %v301, %v546
      %548 = vmatmul.bf16.gmra.mxu0 %v391
      %v549 = vpop.f32.mrf.mxu0
      %v550 = vadd.f32 %v301, %v549
      %v551 = vpop.f32.mrf.mxu0
      %v552 = vadd.f32 %v301, %v551
      %553 = vmatmul.bf16.gmra.mxu0 %v394
      %v554 = vpop.f32.mrf.mxu0
      %v555 = vadd.f32 %v301, %v554
      %v556 = vpop.f32.mrf.mxu0
      %v557 = vadd.f32 %v301, %v556
      %558 = vmatmul.bf16.gmra.mxu0 %v397
      %v559 = vpop.f32.mrf.mxu0
      %v560 = vadd.f32 %v301, %v559
      %v561 = vpop.f32.mrf.mxu0
      %v562 = vadd.f32 %v301, %v561
      %563 = vmatmul.bf16.gmra.mxu0 %v400
      %v564 = vpop.f32.mrf.mxu0
      %v565 = vadd.f32 %v301, %v564
      %v566 = vpop.f32.mrf.mxu0
      %v567 = vadd.f32 %v301, %v566
      %568 = vmatmul.bf16.gmra.mxu0 %v403
      %v569 = vpop.f32.mrf.mxu0
      %v570 = vadd.f32 %v301, %v569
      %v571 = vpop.f32.mrf.mxu0
      %v572 = vadd.f32 %v301, %v571
      %573 = vdwg.mxu0
      %v574 = vmax.f32 %v415, 0.0
      %v575 = vmax.f32 %v417, 0.0
      %v576 = vmax.f32 %v420, 0.0
      %v577 = vmax.f32 %v422, 0.0
      %v578 = vmax.f32 %v425, 0.0
      %v579 = vmax.f32 %v427, 0.0
      %v580 = vmax.f32 %v430, 0.0
      %v581 = vmax.f32 %v432, 0.0
      %v582 = vmax.f32 %v435, 0.0
      %v583 = vmax.f32 %v437, 0.0
      %v584 = vmax.f32 %v440, 0.0
      %v585 = vmax.f32 %v442, 0.0
      %v586 = vmax.f32 %v445, 0.0
      %v587 = vmax.f32 %v447, 0.0
      %v588 = vmax.f32 %v450, 0.0
      %v589 = vmax.f32 %v452, 0.0
      %v590 = vmax.f32 %v455, 0.0
      %v591 = vmax.f32 %v457, 0.0
      %v592 = vmax.f32 %v460, 0.0
      %v593 = vmax.f32 %v462, 0.0
      %v594 = vmax.f32 %v465, 0.0
      %v595 = vmax.f32 %v467, 0.0
      %v596 = vmax.f32 %v470, 0.0
      %v597 = vmax.f32 %v472, 0.0
      %v598 = vmax.f32 %v475, 0.0
      %v599 = vmax.f32 %v477, 0.0
      %v600 = vmax.f32 %v480, 0.0
      %v601 = vmax.f32 %v482, 0.0
      %v602 = vmax.f32 %v485, 0.0
      %v603 = vmax.f32 %v487, 0.0
      %v604 = vmax.f32 %v490, 0.0
      %v605 = vmax.f32 %v492, 0.0
      %v606 = vmax.f32 %v495, 0.0
      %v607 = vmax.f32 %v497, 0.0
      %v608 = vmax.f32 %v500, 0.0
      %v609 = vmax.f32 %v502, 0.0
      %v610 = vmax.f32 %v505, 0.0
      %v611 = vmax.f32 %v507, 0.0
      %v612 = vmax.f32 %v510, 0.0
      %v613 = vmax.f32 %v512, 0.0
      %v614 = vmax.f32 %v515, 0.0
      %v615 = vmax.f32 %v517, 0.0
      %v616 = vmax.f32 %v520, 0.0
      %v617 = vmax.f32 %v522, 0.0
      %v618 = vmax.f32 %v525, 0.0
      %v619 = vmax.f32 %v527, 0.0
      %v620 = vmax.f32 %v530, 0.0
      %v621 = vmax.f32 %v532, 0.0
      %v622 = vmax.f32 %v535, 0.0
      %v623 = vmax.f32 %v537, 0.0
      %v624 = vmax.f32 %v540, 0.0
      %v625 = vmax.f32 %v542, 0.0
      %v626 = vmax.f32 %v545, 0.0
      %v627 = vmax.f32 %v547, 0.0
      %v628 = vmax.f32 %v550, 0.0
      %v629 = vmax.f32 %v552, 0.0
      %v630 = vmax.f32 %v555, 0.0
      %v631 = vmax.f32 %v557, 0.0
      %v632 = vmax.f32 %v560, 0.0
      %v633 = vmax.f32 %v562, 0.0
      %v634 = vmax.f32 %v565, 0.0
      %v635 = vmax.f32 %v567, 0.0
      %v636 = vmax.f32 %v570, 0.0
      %v637 = vmax.f32 %v572, 0.0
      %v638 = vpack.c.bf16 %v575, %v574
      %v639 = vpack.c.bf16 %v577, %v576
      %v640 = vpack.c.bf16 %v579, %v578
      %v641 = vpack.c.bf16 %v581, %v580
      %v642 = vpack.c.bf16 %v583, %v582
      %v643 = vpack.c.bf16 %v585, %v584
      %v644 = vpack.c.bf16 %v587, %v586
      %v645 = vpack.c.bf16 %v589, %v588
      %v646 = vpack.c.bf16 %v591, %v590
      %v647 = vpack.c.bf16 %v593, %v592
      %v648 = vpack.c.bf16 %v595, %v594
      %v649 = vpack.c.bf16 %v597, %v596
      %v650 = vpack.c.bf16 %v599, %v598
      %v651 = vpack.c.bf16 %v601, %v600
      %v652 = vpack.c.bf16 %v603, %v602
      %v653 = vpack.c.bf16 %v605, %v604
      %v654 = vpack.c.bf16 %v607, %v606
      %v655 = vpack.c.bf16 %v609, %v608
      %v656 = vpack.c.bf16 %v611, %v610
      %v657 = vpack.c.bf16 %v613, %v612
      %v658 = vpack.c.bf16 %v615, %v614
      %v659 = vpack.c.bf16 %v617, %v616
      %v660 = vpack.c.bf16 %v619, %v618
      %v661 = vpack.c.bf16 %v621, %v620
      %v662 = vpack.c.bf16 %v623, %v622
      %v663 = vpack.c.bf16 %v625, %v624
      %v664 = vpack.c.bf16 %v627, %v626
      %v665 = vpack.c.bf16 %v629, %v628
      %v666 = vpack.c.bf16 %v631, %v630
      %v667 = vpack.c.bf16 %v633, %v632
      %v668 = vpack.c.bf16 %v635, %v634
      %v669 = vpack.c.bf16 %v637, %v636
      %v670 = vld [vmem:[%s3] sm:$0xf]
      %v671 = vld [vmem:[%s3 + $0x4] sm:$0xf]
      %v672 = vld [vmem:[%s3 + $0x8] sm:$0xf]
      %v673 = vld [vmem:[%s3 + $0xc] sm:$0xf]
      %v674 = vld [vmem:[%s3 + $0x10] sm:$0xf]
      %v675 = vld [vmem:[%s3 + $0x14] sm:$0xf]
      %v676 = vld [vmem:[%s3 + $0x18] sm:$0xf]
      %v677 = vld [vmem:[%s3 + $0x1c] sm:$0xf]
      %v678 = vld [vmem:[%s3 + $0x20] sm:$0xf]
      %v679 = vld [vmem:[%s3 + $0x24] sm:$0xf]
      %v680 = vld [vmem:[%s3 + $0x28] sm:$0xf]
      %v681 = vld [vmem:[%s3 + $0x2c] sm:$0xf]
      %v682 = vld [vmem:[%s3 + $0x30] sm:$0xf]
      %v683 = vld [vmem:[%s3 + $0x34] sm:$0xf]
      %v684 = vld [vmem:[%s3 + $0x38] sm:$0xf]
      %v685 = vld [vmem:[%s3 + $0x3c] sm:$0xf]
      %v686 = vperm.slane %v298, 1
      %v703 = vunpack.c.l.b16 %v670
      %v704 = vunpack.c.l.b16 %v671
      %v705 = vunpack.c.l.b16 %v672
      %v706 = vunpack.c.l.b16 %v673
      %v707 = vunpack.c.l.b16 %v674
      %v708 = vunpack.c.l.b16 %v675
      %v709 = vunpack.c.l.b16 %v676
      %v710 = vunpack.c.l.b16 %v677
      %v711 = vunpack.c.l.b16 %v678
      %v712 = vunpack.c.l.b16 %v679
      %v713 = vunpack.c.l.b16 %v680
      %v714 = vunpack.c.l.b16 %v681
      %v715 = vunpack.c.l.b16 %v682
      %v716 = vunpack.c.l.b16 %v683
      %v717 = vunpack.c.l.b16 %v684
      %v718 = vunpack.c.l.b16 %v685
      %v719 = vpack.c.b16 %v704, %v703
      %v720 = vpack.c.b16 %v706, %v705
      %v721 = vpack.c.b16 %v708, %v707
      %v722 = vpack.c.b16 %v710, %v709
      %v723 = vpack.c.b16 %v712, %v711
      %v724 = vpack.c.b16 %v714, %v713
      %v725 = vpack.c.b16 %v716, %v715
      %v726 = vpack.c.b16 %v718, %v717
      %735 = vmatpush.bf16.msra.mxu0 %v726
      %736 = vmatpush.bf16.msra.mxu0 %v725
      %737 = vmatpush.bf16.msra.mxu0 %v724
      %738 = vmatpush.bf16.msra.mxu0 %v723
      %739 = vmatpush.bf16.msra.mxu0 %v722
      %740 = vmatpush.bf16.msra.mxu0 %v721
      %741 = vmatpush.bf16.msra.mxu0 %v720
      %742 = vmatpush.bf16.msra.mxu0 %v719
      %743 = vmatmul.bf16.gmra.mxu0 %v638
      %v744 = vpop.f32.mrf.mxu0
      %v745 = vadd.f32 %v686, %v744
      %v746 = vpop.f32.mrf.mxu0
      %v747 = vadd.f32 %v686, %v746
      %748 = vmatmul.bf16.gmra.mxu0 %v639
      %v749 = vpop.f32.mrf.mxu0
      %v750 = vadd.f32 %v686, %v749
      %v751 = vpop.f32.mrf.mxu0
      %v752 = vadd.f32 %v686, %v751
      %753 = vmatmul.bf16.gmra.mxu0 %v640
      %v754 = vpop.f32.mrf.mxu0
      %v755 = vadd.f32 %v686, %v754
      %v756 = vpop.f32.mrf.mxu0
      %v757 = vadd.f32 %v686, %v756
      %758 = vmatmul.bf16.gmra.mxu0 %v641
      %v759 = vpop.f32.mrf.mxu0
      %v760 = vadd.f32 %v686, %v759
      %v761 = vpop.f32.mrf.mxu0
      %v762 = vadd.f32 %v686, %v761
      %763 = vmatmul.bf16.gmra.mxu0 %v642
      %v764 = vpop.f32.mrf.mxu0
      %v765 = vadd.f32 %v686, %v764
      %v766 = vpop.f32.mrf.mxu0
      %v767 = vadd.f32 %v686, %v766
      %768 = vmatmul.bf16.gmra.mxu0 %v643
      %v769 = vpop.f32.mrf.mxu0
      %v770 = vadd.f32 %v686, %v769
      %v771 = vpop.f32.mrf.mxu0
      %v772 = vadd.f32 %v686, %v771
      %773 = vmatmul.bf16.gmra.mxu0 %v644
      %v774 = vpop.f32.mrf.mxu0
      %v775 = vadd.f32 %v686, %v774
      %v776 = vpop.f32.mrf.mxu0
      %v777 = vadd.f32 %v686, %v776
      %778 = vmatmul.bf16.gmra.mxu0 %v645
      %v779 = vpop.f32.mrf.mxu0
      %v780 = vadd.f32 %v686, %v779
      %v781 = vpop.f32.mrf.mxu0
      %v782 = vadd.f32 %v686, %v781
      %783 = vmatmul.bf16.gmra.mxu0 %v646
      %v784 = vpop.f32.mrf.mxu0
      %v785 = vadd.f32 %v686, %v784
      %v786 = vpop.f32.mrf.mxu0
      %v787 = vadd.f32 %v686, %v786
      %788 = vmatmul.bf16.gmra.mxu0 %v647
      %v789 = vpop.f32.mrf.mxu0
      %v790 = vadd.f32 %v686, %v789
      %v791 = vpop.f32.mrf.mxu0
      %v792 = vadd.f32 %v686, %v791
      %793 = vmatmul.bf16.gmra.mxu0 %v648
      %v794 = vpop.f32.mrf.mxu0
      %v795 = vadd.f32 %v686, %v794
      %v796 = vpop.f32.mrf.mxu0
      %v797 = vadd.f32 %v686, %v796
      %798 = vmatmul.bf16.gmra.mxu0 %v649
      %v799 = vpop.f32.mrf.mxu0
      %v800 = vadd.f32 %v686, %v799
      %v801 = vpop.f32.mrf.mxu0
      %v802 = vadd.f32 %v686, %v801
      %803 = vmatmul.bf16.gmra.mxu0 %v650
      %v804 = vpop.f32.mrf.mxu0
      %v805 = vadd.f32 %v686, %v804
      %v806 = vpop.f32.mrf.mxu0
      %v807 = vadd.f32 %v686, %v806
      %808 = vmatmul.bf16.gmra.mxu0 %v651
      %v809 = vpop.f32.mrf.mxu0
      %v810 = vadd.f32 %v686, %v809
      %v811 = vpop.f32.mrf.mxu0
      %v812 = vadd.f32 %v686, %v811
      %813 = vmatmul.bf16.gmra.mxu0 %v652
      %v814 = vpop.f32.mrf.mxu0
      %v815 = vadd.f32 %v686, %v814
      %v816 = vpop.f32.mrf.mxu0
      %v817 = vadd.f32 %v686, %v816
      %818 = vmatmul.bf16.gmra.mxu0 %v653
      %v819 = vpop.f32.mrf.mxu0
      %v820 = vadd.f32 %v686, %v819
      %v821 = vpop.f32.mrf.mxu0
      %v822 = vadd.f32 %v686, %v821
      %823 = vmatmul.bf16.gmra.mxu0 %v654
      %v824 = vpop.f32.mrf.mxu0
      %v825 = vadd.f32 %v686, %v824
      %v826 = vpop.f32.mrf.mxu0
      %v827 = vadd.f32 %v686, %v826
      %828 = vmatmul.bf16.gmra.mxu0 %v655
      %v829 = vpop.f32.mrf.mxu0
      %v830 = vadd.f32 %v686, %v829
      %v831 = vpop.f32.mrf.mxu0
      %v832 = vadd.f32 %v686, %v831
      %833 = vmatmul.bf16.gmra.mxu0 %v656
      %v834 = vpop.f32.mrf.mxu0
      %v835 = vadd.f32 %v686, %v834
      %v836 = vpop.f32.mrf.mxu0
      %v837 = vadd.f32 %v686, %v836
      %838 = vmatmul.bf16.gmra.mxu0 %v657
      %v839 = vpop.f32.mrf.mxu0
      %v840 = vadd.f32 %v686, %v839
      %v841 = vpop.f32.mrf.mxu0
      %v842 = vadd.f32 %v686, %v841
      %843 = vmatmul.bf16.gmra.mxu0 %v658
      %v844 = vpop.f32.mrf.mxu0
      %v845 = vadd.f32 %v686, %v844
      %v846 = vpop.f32.mrf.mxu0
      %v847 = vadd.f32 %v686, %v846
      %848 = vmatmul.bf16.gmra.mxu0 %v659
      %v849 = vpop.f32.mrf.mxu0
      %v850 = vadd.f32 %v686, %v849
      %v851 = vpop.f32.mrf.mxu0
      %v852 = vadd.f32 %v686, %v851
      %853 = vmatmul.bf16.gmra.mxu0 %v660
      %v854 = vpop.f32.mrf.mxu0
      %v855 = vadd.f32 %v686, %v854
      %v856 = vpop.f32.mrf.mxu0
      %v857 = vadd.f32 %v686, %v856
      %858 = vmatmul.bf16.gmra.mxu0 %v661
      %v859 = vpop.f32.mrf.mxu0
      %v860 = vadd.f32 %v686, %v859
      %v861 = vpop.f32.mrf.mxu0
      %v862 = vadd.f32 %v686, %v861
      %863 = vmatmul.bf16.gmra.mxu0 %v662
      %v864 = vpop.f32.mrf.mxu0
      %v865 = vadd.f32 %v686, %v864
      %v866 = vpop.f32.mrf.mxu0
      %v867 = vadd.f32 %v686, %v866
      %868 = vmatmul.bf16.gmra.mxu0 %v663
      %v869 = vpop.f32.mrf.mxu0
      %v870 = vadd.f32 %v686, %v869
      %v871 = vpop.f32.mrf.mxu0
      %v872 = vadd.f32 %v686, %v871
      %873 = vmatmul.bf16.gmra.mxu0 %v664
      %v874 = vpop.f32.mrf.mxu0
      %v875 = vadd.f32 %v686, %v874
      %v876 = vpop.f32.mrf.mxu0
      %v877 = vadd.f32 %v686, %v876
      %878 = vmatmul.bf16.gmra.mxu0 %v665
      %v879 = vpop.f32.mrf.mxu0
      %v880 = vadd.f32 %v686, %v879
      %v881 = vpop.f32.mrf.mxu0
      %v882 = vadd.f32 %v686, %v881
      %883 = vmatmul.bf16.gmra.mxu0 %v666
      %v884 = vpop.f32.mrf.mxu0
      %v885 = vadd.f32 %v686, %v884
      %v886 = vpop.f32.mrf.mxu0
      %v887 = vadd.f32 %v686, %v886
      %888 = vmatmul.bf16.gmra.mxu0 %v667
      %v889 = vpop.f32.mrf.mxu0
      %v890 = vadd.f32 %v686, %v889
      %v891 = vpop.f32.mrf.mxu0
      %v892 = vadd.f32 %v686, %v891
      %893 = vmatmul.bf16.gmra.mxu0 %v668
      %v894 = vpop.f32.mrf.mxu0
      %v895 = vadd.f32 %v686, %v894
      %v896 = vpop.f32.mrf.mxu0
      %v897 = vadd.f32 %v686, %v896
      %898 = vmatmul.bf16.gmra.mxu0 %v669
      %v899 = vpop.f32.mrf.mxu0
      %v900 = vadd.f32 %v686, %v899
      %v901 = vpop.f32.mrf.mxu0
      %v902 = vadd.f32 %v686, %v901
      %903 = vdwg.mxu0
      %904 = vmax.xlane.f32.xlu0 %v745
      %v905 = vpop.xlane.xlu0 %904
      %906 = vmax.xlane.f32.xlu0 %v747
      %v907 = vpop.xlane.xlu0 %906
      %908 = vmax.xlane.f32.xlu0 %v750
      %v909 = vpop.xlane.xlu0 %908
      %910 = vmax.xlane.f32.xlu0 %v752
      %v911 = vpop.xlane.xlu0 %910
      %912 = vmax.xlane.f32.xlu0 %v755
      %v913 = vpop.xlane.xlu0 %912
      %914 = vmax.xlane.f32.xlu0 %v757
      %v915 = vpop.xlane.xlu0 %914
      %916 = vmax.xlane.f32.xlu0 %v760
      %v917 = vpop.xlane.xlu0 %916
      %918 = vmax.xlane.f32.xlu0 %v762
      %v919 = vpop.xlane.xlu0 %918
      %920 = vmax.xlane.f32.xlu0 %v765
      %v921 = vpop.xlane.xlu0 %920
      %922 = vmax.xlane.f32.xlu0 %v767
      %v923 = vpop.xlane.xlu0 %922
      %924 = vmax.xlane.f32.xlu0 %v770
      %v925 = vpop.xlane.xlu0 %924
      %926 = vmax.xlane.f32.xlu0 %v772
      %v927 = vpop.xlane.xlu0 %926
      %928 = vmax.xlane.f32.xlu0 %v775
      %v929 = vpop.xlane.xlu0 %928
      %930 = vmax.xlane.f32.xlu0 %v777
      %v931 = vpop.xlane.xlu0 %930
      %932 = vmax.xlane.f32.xlu0 %v780
      %v933 = vpop.xlane.xlu0 %932
      %934 = vmax.xlane.f32.xlu0 %v782
      %v935 = vpop.xlane.xlu0 %934
      %936 = vmax.xlane.f32.xlu0 %v785
      %v937 = vpop.xlane.xlu0 %936
      %938 = vmax.xlane.f32.xlu0 %v787
      %v939 = vpop.xlane.xlu0 %938
      %940 = vmax.xlane.f32.xlu0 %v790
      %v941 = vpop.xlane.xlu0 %940
      %942 = vmax.xlane.f32.xlu0 %v792
      %v943 = vpop.xlane.xlu0 %942
      %944 = vmax.xlane.f32.xlu0 %v795
      %v945 = vpop.xlane.xlu0 %944
      %946 = vmax.xlane.f32.xlu0 %v797
      %v947 = vpop.xlane.xlu0 %946
      %948 = vmax.xlane.f32.xlu0 %v800
      %v949 = vpop.xlane.xlu0 %948
      %950 = vmax.xlane.f32.xlu0 %v802
      %v951 = vpop.xlane.xlu0 %950
      %952 = vmax.xlane.f32.xlu0 %v805
      %v953 = vpop.xlane.xlu0 %952
      %954 = vmax.xlane.f32.xlu0 %v807
      %v955 = vpop.xlane.xlu0 %954
      %956 = vmax.xlane.f32.xlu0 %v810
      %v957 = vpop.xlane.xlu0 %956
      %958 = vmax.xlane.f32.xlu0 %v812
      %v959 = vpop.xlane.xlu0 %958
      %960 = vmax.xlane.f32.xlu0 %v815
      %v961 = vpop.xlane.xlu0 %960
      %962 = vmax.xlane.f32.xlu0 %v817
      %v963 = vpop.xlane.xlu0 %962
      %964 = vmax.xlane.f32.xlu0 %v820
      %v965 = vpop.xlane.xlu0 %964
      %966 = vmax.xlane.f32.xlu0 %v822
      %v967 = vpop.xlane.xlu0 %966
      %968 = vmax.xlane.f32.xlu0 %v825
      %v969 = vpop.xlane.xlu0 %968
      %970 = vmax.xlane.f32.xlu0 %v827
      %v971 = vpop.xlane.xlu0 %970
      %972 = vmax.xlane.f32.xlu0 %v830
      %v973 = vpop.xlane.xlu0 %972
      %974 = vmax.xlane.f32.xlu0 %v832
      %v975 = vpop.xlane.xlu0 %974
      %976 = vmax.xlane.f32.xlu0 %v835
      %v977 = vpop.xlane.xlu0 %976
      %978 = vmax.xlane.f32.xlu0 %v837
      %v979 = vpop.xlane.xlu0 %978
      %980 = vmax.xlane.f32.xlu0 %v840
      %v981 = vpop.xlane.xlu0 %980
      %982 = vmax.xlane.f32.xlu0 %v842
      %v983 = vpop.xlane.xlu0 %982
      %984 = vmax.xlane.f32.xlu0 %v845
      %v985 = vpop.xlane.xlu0 %984
      %986 = vmax.xlane.f32.xlu0 %v847
      %v987 = vpop.xlane.xlu0 %986
      %988 = vmax.xlane.f32.xlu0 %v850
      %v989 = vpop.xlane.xlu0 %988
      %990 = vmax.xlane.f32.xlu0 %v852
      %v991 = vpop.xlane.xlu0 %990
      %992 = vmax.xlane.f32.xlu0 %v855
      %v993 = vpop.xlane.xlu0 %992
      %994 = vmax.xlane.f32.xlu0 %v857
      %v995 = vpop.xlane.xlu0 %994
      %996 = vmax.xlane.f32.xlu0 %v860
      %v997 = vpop.xlane.xlu0 %996
      %998 = vmax.xlane.f32.xlu0 %v862
      %v999 = vpop.xlane.xlu0 %998
      %1000 = vmax.xlane.f32.xlu0 %v865
      %v1001 = vpop.xlane.xlu0 %1000
      %1002 = vmax.xlane.f32.xlu0 %v867
      %v1003 = vpop.xlane.xlu0 %1002
      %1004 = vmax.xlane.f32.xlu0 %v870
      %v1005 = vpop.xlane.xlu0 %1004
      %1006 = vmax.xlane.f32.xlu0 %v872
      %v1007 = vpop.xlane.xlu0 %1006
      %1008 = vmax.xlane.f32.xlu0 %v875
      %v1009 = vpop.xlane.xlu0 %1008
      %1010 = vmax.xlane.f32.xlu0 %v877
      %v1011 = vpop.xlane.xlu0 %1010
      %1012 = vmax.xlane.f32.xlu0 %v880
      %v1013 = vpop.xlane.xlu0 %1012
      %1014 = vmax.xlane.f32.xlu0 %v882
      %v1015 = vpop.xlane.xlu0 %1014
      %1016 = vmax.xlane.f32.xlu0 %v885
      %v1017 = vpop.xlane.xlu0 %1016
      %1018 = vmax.xlane.f32.xlu0 %v887
      %v1019 = vpop.xlane.xlu0 %1018
      %1020 = vmax.xlane.f32.xlu0 %v890
      %v1021 = vpop.xlane.xlu0 %1020
      %1022 = vmax.xlane.f32.xlu0 %v892
      %v1023 = vpop.xlane.xlu0 %1022
      %1024 = vmax.xlane.f32.xlu0 %v895
      %v1025 = vpop.xlane.xlu0 %1024
      %1026 = vmax.xlane.f32.xlu0 %v897
      %v1027 = vpop.xlane.xlu0 %1026
      %1028 = vmax.xlane.f32.xlu0 %v900
      %v1029 = vpop.xlane.xlu0 %1028
      %1030 = vmax.xlane.f32.xlu0 %v902
      %v1031 = vpop.xlane.xlu0 %1030
      %v1032 = vsub.f32 %v745, %v905
      %v1033 = vsub.f32 %v747, %v907
      %v1034 = vsub.f32 %v750, %v909
      %v1035 = vsub.f32 %v752, %v911
      %v1036 = vsub.f32 %v755, %v913
      %v1037 = vsub.f32 %v757, %v915
      %v1038 = vsub.f32 %v760, %v917
      %v1039 = vsub.f32 %v762, %v919
      %v1040 = vsub.f32 %v765, %v921
      %v1041 = vsub.f32 %v767, %v923
      %v1042 = vsub.f32 %v770, %v925
      %v1043 = vsub.f32 %v772, %v927
      %v1044 = vsub.f32 %v775, %v929
      %v1045 = vsub.f32 %v777, %v931
      %v1046 = vsub.f32 %v780, %v933
      %v1047 = vsub.f32 %v782, %v935
      %v1048 = vsub.f32 %v785, %v937
      %v1049 = vsub.f32 %v787, %v939
      %v1050 = vsub.f32 %v790, %v941
      %v1051 = vsub.f32 %v792, %v943
      %v1052 = vsub.f32 %v795, %v945
      %v1053 = vsub.f32 %v797, %v947
      %v1054 = vsub.f32 %v800, %v949
      %v1055 = vsub.f32 %v802, %v951
      %v1056 = vsub.f32 %v805, %v953
      %v1057 = vsub.f32 %v807, %v955
      %v1058 = vsub.f32 %v810, %v957
      %v1059 = vsub.f32 %v812, %v959
      %v1060 = vsub.f32 %v815, %v961
      %v1061 = vsub.f32 %v817, %v963
      %v1062 = vsub.f32 %v820, %v965
      %v1063 = vsub.f32 %v822, %v967
      %v1064 = vsub.f32 %v825, %v969
      %v1065 = vsub.f32 %v827, %v971
      %v1066 = vsub.f32 %v830, %v973
      %v1067 = vsub.f32 %v832, %v975
      %v1068 = vsub.f32 %v835, %v977
      %v1069 = vsub.f32 %v837, %v979
      %v1070 = vsub.f32 %v840, %v981
      %v1071 = vsub.f32 %v842, %v983
      %v1072 = vsub.f32 %v845, %v985
      %v1073 = vsub.f32 %v847, %v987
      %v1074 = vsub.f32 %v850, %v989
      %v1075 = vsub.f32 %v852, %v991
      %v1076 = vsub.f32 %v855, %v993
      %v1077 = vsub.f32 %v857, %v995
      %v1078 = vsub.f32 %v860, %v997
      %v1079 = vsub.f32 %v862, %v999
      %v1080 = vsub.f32 %v865, %v1001
      %v1081 = vsub.f32 %v867, %v1003
      %v1082 = vsub.f32 %v870, %v1005
      %v1083 = vsub.f32 %v872, %v1007
      %v1084 = vsub.f32 %v875, %v1009
      %v1085 = vsub.f32 %v877, %v1011
      %v1086 = vsub.f32 %v880, %v1013
      %v1087 = vsub.f32 %v882, %v1015
      %v1088 = vsub.f32 %v885, %v1017
      %v1089 = vsub.f32 %v887, %v1019
      %v1090 = vsub.f32 %v890, %v1021
      %v1091 = vsub.f32 %v892, %v1023
      %v1092 = vsub.f32 %v895, %v1025
      %v1093 = vsub.f32 %v897, %v1027
      %v1094 = vsub.f32 %v900, %v1029
      %v1095 = vsub.f32 %v902, %v1031
      %v1096 = vmul.f32 %v1032, 1.442695
      %v1097 = vpow.pop %v1096
      %v1098 = vmul.f32 %v1033, 1.442695
      %v1099 = vpow.pop %v1098
      %v1100 = vmul.f32 %v1034, 1.442695
      %v1101 = vpow.pop %v1100
      %v1102 = vmul.f32 %v1035, 1.442695
      %v1103 = vpow.pop %v1102
      %v1104 = vmul.f32 %v1036, 1.442695
      %v1105 = vpow.pop %v1104
      %v1106 = vmul.f32 %v1037, 1.442695
      %v1107 = vpow.pop %v1106
      %v1108 = vmul.f32 %v1038, 1.442695
      %v1109 = vpow.pop %v1108
      %v1110 = vmul.f32 %v1039, 1.442695
      %v1111 = vpow.pop %v1110
      %v1112 = vmul.f32 %v1040, 1.442695
      %v1113 = vpow.pop %v1112
      %v1114 = vmul.f32 %v1041, 1.442695
      %v1115 = vpow.pop %v1114
      %v1116 = vmul.f32 %v1042, 1.442695
      %v1117 = vpow.pop %v1116
      %v1118 = vmul.f32 %v1043, 1.442695
      %v1119 = vpow.pop %v1118
      %v1120 = vmul.f32 %v1044, 1.442695
      %v1121 = vpow.pop %v1120
      %v1122 = vmul.f32 %v1045, 1.442695
      %v1123 = vpow.pop %v1122
      %v1124 = vmul.f32 %v1046, 1.442695
      %v1125 = vpow.pop %v1124
      %v1126 = vmul.f32 %v1047, 1.442695
      %v1127 = vpow.pop %v1126
      %v1128 = vmul.f32 %v1048, 1.442695
      %v1129 = vpow.pop %v1128
      %v1130 = vmul.f32 %v1049, 1.442695
      %v1131 = vpow.pop %v1130
      %v1132 = vmul.f32 %v1050, 1.442695
      %v1133 = vpow.pop %v1132
      %v1134 = vmul.f32 %v1051, 1.442695
      %v1135 = vpow.pop %v1134
      %v1136 = vmul.f32 %v1052, 1.442695
      %v1137 = vpow.pop %v1136
      %v1138 = vmul.f32 %v1053, 1.442695
      %v1139 = vpow.pop %v1138
      %v1140 = vmul.f32 %v1054, 1.442695
      %v1141 = vpow.pop %v1140
      %v1142 = vmul.f32 %v1055, 1.442695
      %v1143 = vpow.pop %v1142
      %v1144 = vmul.f32 %v1056, 1.442695
      %v1145 = vpow.pop %v1144
      %v1146 = vmul.f32 %v1057, 1.442695
      %v1147 = vpow.pop %v1146
      %v1148 = vmul.f32 %v1058, 1.442695
      %v1149 = vpow.pop %v1148
      %v1150 = vmul.f32 %v1059, 1.442695
      %v1151 = vpow.pop %v1150
      %v1152 = vmul.f32 %v1060, 1.442695
      %v1153 = vpow.pop %v1152
      %v1154 = vmul.f32 %v1061, 1.442695
      %v1155 = vpow.pop %v1154
      %v1156 = vmul.f32 %v1062, 1.442695
      %v1157 = vpow.pop %v1156
      %v1158 = vmul.f32 %v1063, 1.442695
      %v1159 = vpow.pop %v1158
      %v1160 = vmul.f32 %v1064, 1.442695
      %v1161 = vpow.pop %v1160
      %v1162 = vmul.f32 %v1065, 1.442695
      %v1163 = vpow.pop %v1162
      %v1164 = vmul.f32 %v1066, 1.442695
      %v1165 = vpow.pop %v1164
      %v1166 = vmul.f32 %v1067, 1.442695
      %v1167 = vpow.pop %v1166
      %v1168 = vmul.f32 %v1068, 1.442695
      %v1169 = vpow.pop %v1168
      %v1170 = vmul.f32 %v1069, 1.442695
      %v1171 = vpow.pop %v1170
      %v1172 = vmul.f32 %v1070, 1.442695
      %v1173 = vpow.pop %v1172
      %v1174 = vmul.f32 %v1071, 1.442695
      %v1175 = vpow.pop %v1174
      %v1176 = vmul.f32 %v1072, 1.442695
      %v1177 = vpow.pop %v1176
      %v1178 = vmul.f32 %v1073, 1.442695
      %v1179 = vpow.pop %v1178
      %v1180 = vmul.f32 %v1074, 1.442695
      %v1181 = vpow.pop %v1180
      %v1182 = vmul.f32 %v1075, 1.442695
      %v1183 = vpow.pop %v1182
      %v1184 = vmul.f32 %v1076, 1.442695
      %v1185 = vpow.pop %v1184
      %v1186 = vmul.f32 %v1077, 1.442695
      %v1187 = vpow.pop %v1186
      %v1188 = vmul.f32 %v1078, 1.442695
      %v1189 = vpow.pop %v1188
      %v1190 = vmul.f32 %v1079, 1.442695
      %v1191 = vpow.pop %v1190
      %v1192 = vmul.f32 %v1080, 1.442695
      %v1193 = vpow.pop %v1192
      %v1194 = vmul.f32 %v1081, 1.442695
      %v1195 = vpow.pop %v1194
      %v1196 = vmul.f32 %v1082, 1.442695
      %v1197 = vpow.pop %v1196
      %v1198 = vmul.f32 %v1083, 1.442695
      %v1199 = vpow.pop %v1198
      %v1200 = vmul.f32 %v1084, 1.442695
      %v1201 = vpow.pop %v1200
      %v1202 = vmul.f32 %v1085, 1.442695
      %v1203 = vpow.pop %v1202
      %v1204 = vmul.f32 %v1086, 1.442695
      %v1205 = vpow.pop %v1204
      %v1206 = vmul.f32 %v1087, 1.442695
      %v1207 = vpow.pop %v1206
      %v1208 = vmul.f32 %v1088, 1.442695
      %v1209 = vpow.pop %v1208
      %v1210 = vmul.f32 %v1089, 1.442695
      %v1211 = vpow.pop %v1210
      %v1212 = vmul.f32 %v1090, 1.442695
      %v1213 = vpow.pop %v1212
      %v1214 = vmul.f32 %v1091, 1.442695
      %v1215 = vpow.pop %v1214
      %v1216 = vmul.f32 %v1092, 1.442695
      %v1217 = vpow.pop %v1216
      %v1218 = vmul.f32 %v1093, 1.442695
      %v1219 = vpow.pop %v1218
      %v1220 = vmul.f32 %v1094, 1.442695
      %v1221 = vpow.pop %v1220
      %v1222 = vmul.f32 %v1095, 1.442695
      %v1223 = vpow.pop %v1222
      %1224 = vadd.xlane.f32.xlu0 %v1097
      %v1225 = vpop.xlane.xlu0 %1224
      %1226 = vadd.xlane.f32.xlu0 %v1099
      %v1227 = vpop.xlane.xlu0 %1226
      %1228 = vadd.xlane.f32.xlu0 %v1101
      %v1229 = vpop.xlane.xlu0 %1228
      %1230 = vadd.xlane.f32.xlu0 %v1103
      %v1231 = vpop.xlane.xlu0 %1230
      %1232 = vadd.xlane.f32.xlu0 %v1105
      %v1233 = vpop.xlane.xlu0 %1232
      %1234 = vadd.xlane.f32.xlu0 %v1107
      %v1235 = vpop.xlane.xlu0 %1234
      %1236 = vadd.xlane.f32.xlu0 %v1109
      %v1237 = vpop.xlane.xlu0 %1236
      %1238 = vadd.xlane.f32.xlu0 %v1111
      %v1239 = vpop.xlane.xlu0 %1238
      %1240 = vadd.xlane.f32.xlu0 %v1113
      %v1241 = vpop.xlane.xlu0 %1240
      %1242 = vadd.xlane.f32.xlu0 %v1115
      %v1243 = vpop.xlane.xlu0 %1242
      %1244 = vadd.xlane.f32.xlu0 %v1117
      %v1245 = vpop.xlane.xlu0 %1244
      %1246 = vadd.xlane.f32.xlu0 %v1119
      %v1247 = vpop.xlane.xlu0 %1246
      %1248 = vadd.xlane.f32.xlu0 %v1121
      %v1249 = vpop.xlane.xlu0 %1248
      %1250 = vadd.xlane.f32.xlu0 %v1123
      %v1251 = vpop.xlane.xlu0 %1250
      %1252 = vadd.xlane.f32.xlu0 %v1125
      %v1253 = vpop.xlane.xlu0 %1252
      %1254 = vadd.xlane.f32.xlu0 %v1127
      %v1255 = vpop.xlane.xlu0 %1254
      %1256 = vadd.xlane.f32.xlu0 %v1129
      %v1257 = vpop.xlane.xlu0 %1256
      %1258 = vadd.xlane.f32.xlu0 %v1131
      %v1259 = vpop.xlane.xlu0 %1258
      %1260 = vadd.xlane.f32.xlu0 %v1133
      %v1261 = vpop.xlane.xlu0 %1260
      %1262 = vadd.xlane.f32.xlu0 %v1135
      %v1263 = vpop.xlane.xlu0 %1262
      %1264 = vadd.xlane.f32.xlu0 %v1137
      %v1265 = vpop.xlane.xlu0 %1264
      %1266 = vadd.xlane.f32.xlu0 %v1139
      %v1267 = vpop.xlane.xlu0 %1266
      %1268 = vadd.xlane.f32.xlu0 %v1141
      %v1269 = vpop.xlane.xlu0 %1268
      %1270 = vadd.xlane.f32.xlu0 %v1143
      %v1271 = vpop.xlane.xlu0 %1270
      %1272 = vadd.xlane.f32.xlu0 %v1145
      %v1273 = vpop.xlane.xlu0 %1272
      %1274 = vadd.xlane.f32.xlu0 %v1147
      %v1275 = vpop.xlane.xlu0 %1274
      %1276 = vadd.xlane.f32.xlu0 %v1149
      %v1277 = vpop.xlane.xlu0 %1276
      %1278 = vadd.xlane.f32.xlu0 %v1151
      %v1279 = vpop.xlane.xlu0 %1278
      %1280 = vadd.xlane.f32.xlu0 %v1153
      %v1281 = vpop.xlane.xlu0 %1280
      %1282 = vadd.xlane.f32.xlu0 %v1155
      %v1283 = vpop.xlane.xlu0 %1282
      %1284 = vadd.xlane.f32.xlu0 %v1157
      %v1285 = vpop.xlane.xlu0 %1284
      %1286 = vadd.xlane.f32.xlu0 %v1159
      %v1287 = vpop.xlane.xlu0 %1286
      %1288 = vadd.xlane.f32.xlu0 %v1161
      %v1289 = vpop.xlane.xlu0 %1288
      %1290 = vadd.xlane.f32.xlu0 %v1163
      %v1291 = vpop.xlane.xlu0 %1290
      %1292 = vadd.xlane.f32.xlu0 %v1165
      %v1293 = vpop.xlane.xlu0 %1292
      %1294 = vadd.xlane.f32.xlu0 %v1167
      %v1295 = vpop.xlane.xlu0 %1294
      %1296 = vadd.xlane.f32.xlu0 %v1169
      %v1297 = vpop.xlane.xlu0 %1296
      %1298 = vadd.xlane.f32.xlu0 %v1171
      %v1299 = vpop.xlane.xlu0 %1298
      %1300 = vadd.xlane.f32.xlu0 %v1173
      %v1301 = vpop.xlane.xlu0 %1300
      %1302 = vadd.xlane.f32.xlu0 %v1175
      %v1303 = vpop.xlane.xlu0 %1302
      %1304 = vadd.xlane.f32.xlu0 %v1177
      %v1305 = vpop.xlane.xlu0 %1304
      %1306 = vadd.xlane.f32.xlu0 %v1179
      %v1307 = vpop.xlane.xlu0 %1306
      %1308 = vadd.xlane.f32.xlu0 %v1181
      %v1309 = vpop.xlane.xlu0 %1308
      %1310 = vadd.xlane.f32.xlu0 %v1183
      %v1311 = vpop.xlane.xlu0 %1310
      %1312 = vadd.xlane.f32.xlu0 %v1185
      %v1313 = vpop.xlane.xlu0 %1312
      %1314 = vadd.xlane.f32.xlu0 %v1187
      %v1315 = vpop.xlane.xlu0 %1314
      %1316 = vadd.xlane.f32.xlu0 %v1189
      %v1317 = vpop.xlane.xlu0 %1316
      %1318 = vadd.xlane.f32.xlu0 %v1191
      %v1319 = vpop.xlane.xlu0 %1318
      %1320 = vadd.xlane.f32.xlu0 %v1193
      %v1321 = vpop.xlane.xlu0 %1320
      %1322 = vadd.xlane.f32.xlu0 %v1195
      %v1323 = vpop.xlane.xlu0 %1322
      %1324 = vadd.xlane.f32.xlu0 %v1197
      %v1325 = vpop.xlane.xlu0 %1324
      %1326 = vadd.xlane.f32.xlu0 %v1199
      %v1327 = vpop.xlane.xlu0 %1326
      %1328 = vadd.xlane.f32.xlu0 %v1201
      %v1329 = vpop.xlane.xlu0 %1328
      %1330 = vadd.xlane.f32.xlu0 %v1203
      %v1331 = vpop.xlane.xlu0 %1330
      %1332 = vadd.xlane.f32.xlu0 %v1205
      %v1333 = vpop.xlane.xlu0 %1332
      %1334 = vadd.xlane.f32.xlu0 %v1207
      %v1335 = vpop.xlane.xlu0 %1334
      %1336 = vadd.xlane.f32.xlu0 %v1209
      %v1337 = vpop.xlane.xlu0 %1336
      %1338 = vadd.xlane.f32.xlu0 %v1211
      %v1339 = vpop.xlane.xlu0 %1338
      %1340 = vadd.xlane.f32.xlu0 %v1213
      %v1341 = vpop.xlane.xlu0 %1340
      %1342 = vadd.xlane.f32.xlu0 %v1215
      %v1343 = vpop.xlane.xlu0 %1342
      %1344 = vadd.xlane.f32.xlu0 %v1217
      %v1345 = vpop.xlane.xlu0 %1344
      %1346 = vadd.xlane.f32.xlu0 %v1219
      %v1347 = vpop.xlane.xlu0 %1346
      %1348 = vadd.xlane.f32.xlu0 %v1221
      %v1349 = vpop.xlane.xlu0 %1348
      %1350 = vadd.xlane.f32.xlu0 %v1223
      %v1351 = vpop.xlane.xlu0 %1350
      %v1352 = vrcp.pop %v1225
      %v1353 = vmul.f32 %v1225, %v1352
      %v1354 = vsub.f32 1.0, %v1353
      %v1355 = vmul.f32 %v1352, %v1354
      %v1356 = vadd.f32 %v1352, %v1355
      %vm1357 = vweird.f32 %v1225
      %vm1358 = vweird.f32 %v1352
      %vm1359 = vmor %vm1357, %vm1358
      %v1360 = vsel %vm1359, %v1352, %v1356
      %v1361 = vand.u32 2147483647, %v1225
      %vm1362 = vcmp.eq.f32.partialorder %v1361, 8.507059e+37
      %v1363 = vand.u32 %v1225, 2147483648
      %v1364 = vor.u32 1.1754944e-38, %v1363
      %v1365 = vsel %vm1362, %v1364, %v1360
      %v1366 = vmul.f32 %v1097, %v1365
      %v1367 = vrcp.pop %v1227
      %v1368 = vmul.f32 %v1227, %v1367
      %v1369 = vsub.f32 1.0, %v1368
      %v1370 = vmul.f32 %v1367, %v1369
      %v1371 = vadd.f32 %v1367, %v1370
      %vm1372 = vweird.f32 %v1227
      %vm1373 = vweird.f32 %v1367
      %vm1374 = vmor %vm1372, %vm1373
      %v1375 = vsel %vm1374, %v1367, %v1371
      %v1376 = vand.u32 2147483647, %v1227
      %vm1377 = vcmp.eq.f32.partialorder %v1376, 8.507059e+37
      %v1378 = vand.u32 %v1227, 2147483648
      %v1379 = vor.u32 1.1754944e-38, %v1378
      %v1380 = vsel %vm1377, %v1379, %v1375
      %v1381 = vmul.f32 %v1099, %v1380
      %v1382 = vrcp.pop %v1229
      %v1383 = vmul.f32 %v1229, %v1382
      %v1384 = vsub.f32 1.0, %v1383
      %v1385 = vmul.f32 %v1382, %v1384
      %v1386 = vadd.f32 %v1382, %v1385
      %vm1387 = vweird.f32 %v1229
      %vm1388 = vweird.f32 %v1382
      %vm1389 = vmor %vm1387, %vm1388
      %v1390 = vsel %vm1389, %v1382, %v1386
      %v1391 = vand.u32 2147483647, %v1229
      %vm1392 = vcmp.eq.f32.partialorder %v1391, 8.507059e+37
      %v1393 = vand.u32 %v1229, 2147483648
      %v1394 = vor.u32 1.1754944e-38, %v1393
      %v1395 = vsel %vm1392, %v1394, %v1390
      %v1396 = vmul.f32 %v1101, %v1395
      %v1397 = vrcp.pop %v1231
      %v1398 = vmul.f32 %v1231, %v1397
      %v1399 = vsub.f32 1.0, %v1398
      %v1400 = vmul.f32 %v1397, %v1399
      %v1401 = vadd.f32 %v1397, %v1400
      %vm1402 = vweird.f32 %v1231
      %vm1403 = vweird.f32 %v1397
      %vm1404 = vmor %vm1402, %vm1403
      %v1405 = vsel %vm1404, %v1397, %v1401
      %v1406 = vand.u32 2147483647, %v1231
      %vm1407 = vcmp.eq.f32.partialorder %v1406, 8.507059e+37
      %v1408 = vand.u32 %v1231, 2147483648
      %v1409 = vor.u32 1.1754944e-38, %v1408
      %v1410 = vsel %vm1407, %v1409, %v1405
      %v1411 = vmul.f32 %v1103, %v1410
      %v1412 = vrcp.pop %v1233
      %v1413 = vmul.f32 %v1233, %v1412
      %v1414 = vsub.f32 1.0, %v1413
      %v1415 = vmul.f32 %v1412, %v1414
      %v1416 = vadd.f32 %v1412, %v1415
      %vm1417 = vweird.f32 %v1233
      %vm1418 = vweird.f32 %v1412
      %vm1419 = vmor %vm1417, %vm1418
      %v1420 = vsel %vm1419, %v1412, %v1416
      %v1421 = vand.u32 2147483647, %v1233
      %vm1422 = vcmp.eq.f32.partialorder %v1421, 8.507059e+37
      %v1423 = vand.u32 %v1233, 2147483648
      %v1424 = vor.u32 1.1754944e-38, %v1423
      %v1425 = vsel %vm1422, %v1424, %v1420
      %v1426 = vmul.f32 %v1105, %v1425
      %v1427 = vrcp.pop %v1235
      %v1428 = vmul.f32 %v1235, %v1427
      %v1429 = vsub.f32 1.0, %v1428
      %v1430 = vmul.f32 %v1427, %v1429
      %v1431 = vadd.f32 %v1427, %v1430
      %vm1432 = vweird.f32 %v1235
      %vm1433 = vweird.f32 %v1427
      %vm1434 = vmor %vm1432, %vm1433
      %v1435 = vsel %vm1434, %v1427, %v1431
      %v1436 = vand.u32 2147483647, %v1235
      %vm1437 = vcmp.eq.f32.partialorder %v1436, 8.507059e+37
      %v1438 = vand.u32 %v1235, 2147483648
      %v1439 = vor.u32 1.1754944e-38, %v1438
      %v1440 = vsel %vm1437, %v1439, %v1435
      %v1441 = vmul.f32 %v1107, %v1440
      %v1442 = vrcp.pop %v1237
      %v1443 = vmul.f32 %v1237, %v1442
      %v1444 = vsub.f32 1.0, %v1443
      %v1445 = vmul.f32 %v1442, %v1444
      %v1446 = vadd.f32 %v1442, %v1445
      %vm1447 = vweird.f32 %v1237
      %vm1448 = vweird.f32 %v1442
      %vm1449 = vmor %vm1447, %vm1448
      %v1450 = vsel %vm1449, %v1442, %v1446
      %v1451 = vand.u32 2147483647, %v1237
      %vm1452 = vcmp.eq.f32.partialorder %v1451, 8.507059e+37
      %v1453 = vand.u32 %v1237, 2147483648
      %v1454 = vor.u32 1.1754944e-38, %v1453
      %v1455 = vsel %vm1452, %v1454, %v1450
      %v1456 = vmul.f32 %v1109, %v1455
      %v1457 = vrcp.pop %v1239
      %v1458 = vmul.f32 %v1239, %v1457
      %v1459 = vsub.f32 1.0, %v1458
      %v1460 = vmul.f32 %v1457, %v1459
      %v1461 = vadd.f32 %v1457, %v1460
      %vm1462 = vweird.f32 %v1239
      %vm1463 = vweird.f32 %v1457
      %vm1464 = vmor %vm1462, %vm1463
      %v1465 = vsel %vm1464, %v1457, %v1461
      %v1466 = vand.u32 2147483647, %v1239
      %vm1467 = vcmp.eq.f32.partialorder %v1466, 8.507059e+37
      %v1468 = vand.u32 %v1239, 2147483648
      %v1469 = vor.u32 1.1754944e-38, %v1468
      %v1470 = vsel %vm1467, %v1469, %v1465
      %v1471 = vmul.f32 %v1111, %v1470
      %v1472 = vrcp.pop %v1241
      %v1473 = vmul.f32 %v1241, %v1472
      %v1474 = vsub.f32 1.0, %v1473
      %v1475 = vmul.f32 %v1472, %v1474
      %v1476 = vadd.f32 %v1472, %v1475
      %vm1477 = vweird.f32 %v1241
      %vm1478 = vweird.f32 %v1472
      %vm1479 = vmor %vm1477, %vm1478
      %v1480 = vsel %vm1479, %v1472, %v1476
      %v1481 = vand.u32 2147483647, %v1241
      %vm1482 = vcmp.eq.f32.partialorder %v1481, 8.507059e+37
      %v1483 = vand.u32 %v1241, 2147483648
      %v1484 = vor.u32 1.1754944e-38, %v1483
      %v1485 = vsel %vm1482, %v1484, %v1480
      %v1486 = vmul.f32 %v1113, %v1485
      %v1487 = vrcp.pop %v1243
      %v1488 = vmul.f32 %v1243, %v1487
      %v1489 = vsub.f32 1.0, %v1488
      %v1490 = vmul.f32 %v1487, %v1489
      %v1491 = vadd.f32 %v1487, %v1490
      %vm1492 = vweird.f32 %v1243
      %vm1493 = vweird.f32 %v1487
      %vm1494 = vmor %vm1492, %vm1493
      %v1495 = vsel %vm1494, %v1487, %v1491
      %v1496 = vand.u32 2147483647, %v1243
      %vm1497 = vcmp.eq.f32.partialorder %v1496, 8.507059e+37
      %v1498 = vand.u32 %v1243, 2147483648
      %v1499 = vor.u32 1.1754944e-38, %v1498
      %v1500 = vsel %vm1497, %v1499, %v1495
      %v1501 = vmul.f32 %v1115, %v1500
      %v1502 = vrcp.pop %v1245
      %v1503 = vmul.f32 %v1245, %v1502
      %v1504 = vsub.f32 1.0, %v1503
      %v1505 = vmul.f32 %v1502, %v1504
      %v1506 = vadd.f32 %v1502, %v1505
      %vm1507 = vweird.f32 %v1245
      %vm1508 = vweird.f32 %v1502
      %vm1509 = vmor %vm1507, %vm1508
      %v1510 = vsel %vm1509, %v1502, %v1506
      %v1511 = vand.u32 2147483647, %v1245
      %vm1512 = vcmp.eq.f32.partialorder %v1511, 8.507059e+37
      %v1513 = vand.u32 %v1245, 2147483648
      %v1514 = vor.u32 1.1754944e-38, %v1513
      %v1515 = vsel %vm1512, %v1514, %v1510
      %v1516 = vmul.f32 %v1117, %v1515
      %v1517 = vrcp.pop %v1247
      %v1518 = vmul.f32 %v1247, %v1517
      %v1519 = vsub.f32 1.0, %v1518
      %v1520 = vmul.f32 %v1517, %v1519
      %v1521 = vadd.f32 %v1517, %v1520
      %vm1522 = vweird.f32 %v1247
      %vm1523 = vweird.f32 %v1517
      %vm1524 = vmor %vm1522, %vm1523
      %v1525 = vsel %vm1524, %v1517, %v1521
      %v1526 = vand.u32 2147483647, %v1247
      %vm1527 = vcmp.eq.f32.partialorder %v1526, 8.507059e+37
      %v1528 = vand.u32 %v1247, 2147483648
      %v1529 = vor.u32 1.1754944e-38, %v1528
      %v1530 = vsel %vm1527, %v1529, %v1525
      %v1531 = vmul.f32 %v1119, %v1530
      %v1532 = vrcp.pop %v1249
      %v1533 = vmul.f32 %v1249, %v1532
      %v1534 = vsub.f32 1.0, %v1533
      %v1535 = vmul.f32 %v1532, %v1534
      %v1536 = vadd.f32 %v1532, %v1535
      %vm1537 = vweird.f32 %v1249
      %vm1538 = vweird.f32 %v1532
      %vm1539 = vmor %vm1537, %vm1538
      %v1540 = vsel %vm1539, %v1532, %v1536
      %v1541 = vand.u32 2147483647, %v1249
      %vm1542 = vcmp.eq.f32.partialorder %v1541, 8.507059e+37
      %v1543 = vand.u32 %v1249, 2147483648
      %v1544 = vor.u32 1.1754944e-38, %v1543
      %v1545 = vsel %vm1542, %v1544, %v1540
      %v1546 = vmul.f32 %v1121, %v1545
      %v1547 = vrcp.pop %v1251
      %v1548 = vmul.f32 %v1251, %v1547
      %v1549 = vsub.f32 1.0, %v1548
      %v1550 = vmul.f32 %v1547, %v1549
      %v1551 = vadd.f32 %v1547, %v1550
      %vm1552 = vweird.f32 %v1251
      %vm1553 = vweird.f32 %v1547
      %vm1554 = vmor %vm1552, %vm1553
      %v1555 = vsel %vm1554, %v1547, %v1551
      %v1556 = vand.u32 2147483647, %v1251
      %vm1557 = vcmp.eq.f32.partialorder %v1556, 8.507059e+37
      %v1558 = vand.u32 %v1251, 2147483648
      %v1559 = vor.u32 1.1754944e-38, %v1558
      %v1560 = vsel %vm1557, %v1559, %v1555
      %v1561 = vmul.f32 %v1123, %v1560
      %v1562 = vrcp.pop %v1253
      %v1563 = vmul.f32 %v1253, %v1562
      %v1564 = vsub.f32 1.0, %v1563
      %v1565 = vmul.f32 %v1562, %v1564
      %v1566 = vadd.f32 %v1562, %v1565
      %vm1567 = vweird.f32 %v1253
      %vm1568 = vweird.f32 %v1562
      %vm1569 = vmor %vm1567, %vm1568
      %v1570 = vsel %vm1569, %v1562, %v1566
      %v1571 = vand.u32 2147483647, %v1253
      %vm1572 = vcmp.eq.f32.partialorder %v1571, 8.507059e+37
      %v1573 = vand.u32 %v1253, 2147483648
      %v1574 = vor.u32 1.1754944e-38, %v1573
      %v1575 = vsel %vm1572, %v1574, %v1570
      %v1576 = vmul.f32 %v1125, %v1575
      %v1577 = vrcp.pop %v1255
      %v1578 = vmul.f32 %v1255, %v1577
      %v1579 = vsub.f32 1.0, %v1578
      %v1580 = vmul.f32 %v1577, %v1579
      %v1581 = vadd.f32 %v1577, %v1580
      %vm1582 = vweird.f32 %v1255
      %vm1583 = vweird.f32 %v1577
      %vm1584 = vmor %vm1582, %vm1583
      %v1585 = vsel %vm1584, %v1577, %v1581
      %v1586 = vand.u32 2147483647, %v1255
      %vm1587 = vcmp.eq.f32.partialorder %v1586, 8.507059e+37
      %v1588 = vand.u32 %v1255, 2147483648
      %v1589 = vor.u32 1.1754944e-38, %v1588
      %v1590 = vsel %vm1587, %v1589, %v1585
      %v1591 = vmul.f32 %v1127, %v1590
      %v1592 = vrcp.pop %v1257
      %v1593 = vmul.f32 %v1257, %v1592
      %v1594 = vsub.f32 1.0, %v1593
      %v1595 = vmul.f32 %v1592, %v1594
      %v1596 = vadd.f32 %v1592, %v1595
      %vm1597 = vweird.f32 %v1257
      %vm1598 = vweird.f32 %v1592
      %vm1599 = vmor %vm1597, %vm1598
      %v1600 = vsel %vm1599, %v1592, %v1596
      %v1601 = vand.u32 2147483647, %v1257
      %vm1602 = vcmp.eq.f32.partialorder %v1601, 8.507059e+37
      %v1603 = vand.u32 %v1257, 2147483648
      %v1604 = vor.u32 1.1754944e-38, %v1603
      %v1605 = vsel %vm1602, %v1604, %v1600
      %v1606 = vmul.f32 %v1129, %v1605
      %v1607 = vrcp.pop %v1259
      %v1608 = vmul.f32 %v1259, %v1607
      %v1609 = vsub.f32 1.0, %v1608
      %v1610 = vmul.f32 %v1607, %v1609
      %v1611 = vadd.f32 %v1607, %v1610
      %vm1612 = vweird.f32 %v1259
      %vm1613 = vweird.f32 %v1607
      %vm1614 = vmor %vm1612, %vm1613
      %v1615 = vsel %vm1614, %v1607, %v1611
      %v1616 = vand.u32 2147483647, %v1259
      %vm1617 = vcmp.eq.f32.partialorder %v1616, 8.507059e+37
      %v1618 = vand.u32 %v1259, 2147483648
      %v1619 = vor.u32 1.1754944e-38, %v1618
      %v1620 = vsel %vm1617, %v1619, %v1615
      %v1621 = vmul.f32 %v1131, %v1620
      %v1622 = vrcp.pop %v1261
      %v1623 = vmul.f32 %v1261, %v1622
      %v1624 = vsub.f32 1.0, %v1623
      %v1625 = vmul.f32 %v1622, %v1624
      %v1626 = vadd.f32 %v1622, %v1625
      %vm1627 = vweird.f32 %v1261
      %vm1628 = vweird.f32 %v1622
      %vm1629 = vmor %vm1627, %vm1628
      %v1630 = vsel %vm1629, %v1622, %v1626
      %v1631 = vand.u32 2147483647, %v1261
      %vm1632 = vcmp.eq.f32.partialorder %v1631, 8.507059e+37
      %v1633 = vand.u32 %v1261, 2147483648
      %v1634 = vor.u32 1.1754944e-38, %v1633
      %v1635 = vsel %vm1632, %v1634, %v1630
      %v1636 = vmul.f32 %v1133, %v1635
      %v1637 = vrcp.pop %v1263
      %v1638 = vmul.f32 %v1263, %v1637
      %v1639 = vsub.f32 1.0, %v1638
      %v1640 = vmul.f32 %v1637, %v1639
      %v1641 = vadd.f32 %v1637, %v1640
      %vm1642 = vweird.f32 %v1263
      %vm1643 = vweird.f32 %v1637
      %vm1644 = vmor %vm1642, %vm1643
      %v1645 = vsel %vm1644, %v1637, %v1641
      %v1646 = vand.u32 2147483647, %v1263
      %vm1647 = vcmp.eq.f32.partialorder %v1646, 8.507059e+37
      %v1648 = vand.u32 %v1263, 2147483648
      %v1649 = vor.u32 1.1754944e-38, %v1648
      %v1650 = vsel %vm1647, %v1649, %v1645
      %v1651 = vmul.f32 %v1135, %v1650
      %v1652 = vrcp.pop %v1265
      %v1653 = vmul.f32 %v1265, %v1652
      %v1654 = vsub.f32 1.0, %v1653
      %v1655 = vmul.f32 %v1652, %v1654
      %v1656 = vadd.f32 %v1652, %v1655
      %vm1657 = vweird.f32 %v1265
      %vm1658 = vweird.f32 %v1652
      %vm1659 = vmor %vm1657, %vm1658
      %v1660 = vsel %vm1659, %v1652, %v1656
      %v1661 = vand.u32 2147483647, %v1265
      %vm1662 = vcmp.eq.f32.partialorder %v1661, 8.507059e+37
      %v1663 = vand.u32 %v1265, 2147483648
      %v1664 = vor.u32 1.1754944e-38, %v1663
      %v1665 = vsel %vm1662, %v1664, %v1660
      %v1666 = vmul.f32 %v1137, %v1665
      %v1667 = vrcp.pop %v1267
      %v1668 = vmul.f32 %v1267, %v1667
      %v1669 = vsub.f32 1.0, %v1668
      %v1670 = vmul.f32 %v1667, %v1669
      %v1671 = vadd.f32 %v1667, %v1670
      %vm1672 = vweird.f32 %v1267
      %vm1673 = vweird.f32 %v1667
      %vm1674 = vmor %vm1672, %vm1673
      %v1675 = vsel %vm1674, %v1667, %v1671
      %v1676 = vand.u32 2147483647, %v1267
      %vm1677 = vcmp.eq.f32.partialorder %v1676, 8.507059e+37
      %v1678 = vand.u32 %v1267, 2147483648
      %v1679 = vor.u32 1.1754944e-38, %v1678
      %v1680 = vsel %vm1677, %v1679, %v1675
      %v1681 = vmul.f32 %v1139, %v1680
      %v1682 = vrcp.pop %v1269
      %v1683 = vmul.f32 %v1269, %v1682
      %v1684 = vsub.f32 1.0, %v1683
      %v1685 = vmul.f32 %v1682, %v1684
      %v1686 = vadd.f32 %v1682, %v1685
      %vm1687 = vweird.f32 %v1269
      %vm1688 = vweird.f32 %v1682
      %vm1689 = vmor %vm1687, %vm1688
      %v1690 = vsel %vm1689, %v1682, %v1686
      %v1691 = vand.u32 2147483647, %v1269
      %vm1692 = vcmp.eq.f32.partialorder %v1691, 8.507059e+37
      %v1693 = vand.u32 %v1269, 2147483648
      %v1694 = vor.u32 1.1754944e-38, %v1693
      %v1695 = vsel %vm1692, %v1694, %v1690
      %v1696 = vmul.f32 %v1141, %v1695
      %v1697 = vrcp.pop %v1271
      %v1698 = vmul.f32 %v1271, %v1697
      %v1699 = vsub.f32 1.0, %v1698
      %v1700 = vmul.f32 %v1697, %v1699
      %v1701 = vadd.f32 %v1697, %v1700
      %vm1702 = vweird.f32 %v1271
      %vm1703 = vweird.f32 %v1697
      %vm1704 = vmor %vm1702, %vm1703
      %v1705 = vsel %vm1704, %v1697, %v1701
      %v1706 = vand.u32 2147483647, %v1271
      %vm1707 = vcmp.eq.f32.partialorder %v1706, 8.507059e+37
      %v1708 = vand.u32 %v1271, 2147483648
      %v1709 = vor.u32 1.1754944e-38, %v1708
      %v1710 = vsel %vm1707, %v1709, %v1705
      %v1711 = vmul.f32 %v1143, %v1710
      %v1712 = vrcp.pop %v1273
      %v1713 = vmul.f32 %v1273, %v1712
      %v1714 = vsub.f32 1.0, %v1713
      %v1715 = vmul.f32 %v1712, %v1714
      %v1716 = vadd.f32 %v1712, %v1715
      %vm1717 = vweird.f32 %v1273
      %vm1718 = vweird.f32 %v1712
      %vm1719 = vmor %vm1717, %vm1718
      %v1720 = vsel %vm1719, %v1712, %v1716
      %v1721 = vand.u32 2147483647, %v1273
      %vm1722 = vcmp.eq.f32.partialorder %v1721, 8.507059e+37
      %v1723 = vand.u32 %v1273, 2147483648
      %v1724 = vor.u32 1.1754944e-38, %v1723
      %v1725 = vsel %vm1722, %v1724, %v1720
      %v1726 = vmul.f32 %v1145, %v1725
      %v1727 = vrcp.pop %v1275
      %v1728 = vmul.f32 %v1275, %v1727
      %v1729 = vsub.f32 1.0, %v1728
      %v1730 = vmul.f32 %v1727, %v1729
      %v1731 = vadd.f32 %v1727, %v1730
      %vm1732 = vweird.f32 %v1275
      %vm1733 = vweird.f32 %v1727
      %vm1734 = vmor %vm1732, %vm1733
      %v1735 = vsel %vm1734, %v1727, %v1731
      %v1736 = vand.u32 2147483647, %v1275
      %vm1737 = vcmp.eq.f32.partialorder %v1736, 8.507059e+37
      %v1738 = vand.u32 %v1275, 2147483648
      %v1739 = vor.u32 1.1754944e-38, %v1738
      %v1740 = vsel %vm1737, %v1739, %v1735
      %v1741 = vmul.f32 %v1147, %v1740
      %v1742 = vrcp.pop %v1277
      %v1743 = vmul.f32 %v1277, %v1742
      %v1744 = vsub.f32 1.0, %v1743
      %v1745 = vmul.f32 %v1742, %v1744
      %v1746 = vadd.f32 %v1742, %v1745
      %vm1747 = vweird.f32 %v1277
      %vm1748 = vweird.f32 %v1742
      %vm1749 = vmor %vm1747, %vm1748
      %v1750 = vsel %vm1749, %v1742, %v1746
      %v1751 = vand.u32 2147483647, %v1277
      %vm1752 = vcmp.eq.f32.partialorder %v1751, 8.507059e+37
      %v1753 = vand.u32 %v1277, 2147483648
      %v1754 = vor.u32 1.1754944e-38, %v1753
      %v1755 = vsel %vm1752, %v1754, %v1750
      %v1756 = vmul.f32 %v1149, %v1755
      %v1757 = vrcp.pop %v1279
      %v1758 = vmul.f32 %v1279, %v1757
      %v1759 = vsub.f32 1.0, %v1758
      %v1760 = vmul.f32 %v1757, %v1759
      %v1761 = vadd.f32 %v1757, %v1760
      %vm1762 = vweird.f32 %v1279
      %vm1763 = vweird.f32 %v1757
      %vm1764 = vmor %vm1762, %vm1763
      %v1765 = vsel %vm1764, %v1757, %v1761
      %v1766 = vand.u32 2147483647, %v1279
      %vm1767 = vcmp.eq.f32.partialorder %v1766, 8.507059e+37
      %v1768 = vand.u32 %v1279, 2147483648
      %v1769 = vor.u32 1.1754944e-38, %v1768
      %v1770 = vsel %vm1767, %v1769, %v1765
      %v1771 = vmul.f32 %v1151, %v1770
      %v1772 = vrcp.pop %v1281
      %v1773 = vmul.f32 %v1281, %v1772
      %v1774 = vsub.f32 1.0, %v1773
      %v1775 = vmul.f32 %v1772, %v1774
      %v1776 = vadd.f32 %v1772, %v1775
      %vm1777 = vweird.f32 %v1281
      %vm1778 = vweird.f32 %v1772
      %vm1779 = vmor %vm1777, %vm1778
      %v1780 = vsel %vm1779, %v1772, %v1776
      %v1781 = vand.u32 2147483647, %v1281
      %vm1782 = vcmp.eq.f32.partialorder %v1781, 8.507059e+37
      %v1783 = vand.u32 %v1281, 2147483648
      %v1784 = vor.u32 1.1754944e-38, %v1783
      %v1785 = vsel %vm1782, %v1784, %v1780
      %v1786 = vmul.f32 %v1153, %v1785
      %v1787 = vrcp.pop %v1283
      %v1788 = vmul.f32 %v1283, %v1787
      %v1789 = vsub.f32 1.0, %v1788
      %v1790 = vmul.f32 %v1787, %v1789
      %v1791 = vadd.f32 %v1787, %v1790
      %vm1792 = vweird.f32 %v1283
      %vm1793 = vweird.f32 %v1787
      %vm1794 = vmor %vm1792, %vm1793
      %v1795 = vsel %vm1794, %v1787, %v1791
      %v1796 = vand.u32 2147483647, %v1283
      %vm1797 = vcmp.eq.f32.partialorder %v1796, 8.507059e+37
      %v1798 = vand.u32 %v1283, 2147483648
      %v1799 = vor.u32 1.1754944e-38, %v1798
      %v1800 = vsel %vm1797, %v1799, %v1795
      %v1801 = vmul.f32 %v1155, %v1800
      %v1802 = vrcp.pop %v1285
      %v1803 = vmul.f32 %v1285, %v1802
      %v1804 = vsub.f32 1.0, %v1803
      %v1805 = vmul.f32 %v1802, %v1804
      %v1806 = vadd.f32 %v1802, %v1805
      %vm1807 = vweird.f32 %v1285
      %vm1808 = vweird.f32 %v1802
      %vm1809 = vmor %vm1807, %vm1808
      %v1810 = vsel %vm1809, %v1802, %v1806
      %v1811 = vand.u32 2147483647, %v1285
      %vm1812 = vcmp.eq.f32.partialorder %v1811, 8.507059e+37
      %v1813 = vand.u32 %v1285, 2147483648
      %v1814 = vor.u32 1.1754944e-38, %v1813
      %v1815 = vsel %vm1812, %v1814, %v1810
      %v1816 = vmul.f32 %v1157, %v1815
      %v1817 = vrcp.pop %v1287
      %v1818 = vmul.f32 %v1287, %v1817
      %v1819 = vsub.f32 1.0, %v1818
      %v1820 = vmul.f32 %v1817, %v1819
      %v1821 = vadd.f32 %v1817, %v1820
      %vm1822 = vweird.f32 %v1287
      %vm1823 = vweird.f32 %v1817
      %vm1824 = vmor %vm1822, %vm1823
      %v1825 = vsel %vm1824, %v1817, %v1821
      %v1826 = vand.u32 2147483647, %v1287
      %vm1827 = vcmp.eq.f32.partialorder %v1826, 8.507059e+37
      %v1828 = vand.u32 %v1287, 2147483648
      %v1829 = vor.u32 1.1754944e-38, %v1828
      %v1830 = vsel %vm1827, %v1829, %v1825
      %v1831 = vmul.f32 %v1159, %v1830
      %v1832 = vrcp.pop %v1289
      %v1833 = vmul.f32 %v1289, %v1832
      %v1834 = vsub.f32 1.0, %v1833
      %v1835 = vmul.f32 %v1832, %v1834
      %v1836 = vadd.f32 %v1832, %v1835
      %vm1837 = vweird.f32 %v1289
      %vm1838 = vweird.f32 %v1832
      %vm1839 = vmor %vm1837, %vm1838
      %v1840 = vsel %vm1839, %v1832, %v1836
      %v1841 = vand.u32 2147483647, %v1289
      %vm1842 = vcmp.eq.f32.partialorder %v1841, 8.507059e+37
      %v1843 = vand.u32 %v1289, 2147483648
      %v1844 = vor.u32 1.1754944e-38, %v1843
      %v1845 = vsel %vm1842, %v1844, %v1840
      %v1846 = vmul.f32 %v1161, %v1845
      %v1847 = vrcp.pop %v1291
      %v1848 = vmul.f32 %v1291, %v1847
      %v1849 = vsub.f32 1.0, %v1848
      %v1850 = vmul.f32 %v1847, %v1849
      %v1851 = vadd.f32 %v1847, %v1850
      %vm1852 = vweird.f32 %v1291
      %vm1853 = vweird.f32 %v1847
      %vm1854 = vmor %vm1852, %vm1853
      %v1855 = vsel %vm1854, %v1847, %v1851
      %v1856 = vand.u32 2147483647, %v1291
      %vm1857 = vcmp.eq.f32.partialorder %v1856, 8.507059e+37
      %v1858 = vand.u32 %v1291, 2147483648
      %v1859 = vor.u32 1.1754944e-38, %v1858
      %v1860 = vsel %vm1857, %v1859, %v1855
      %v1861 = vmul.f32 %v1163, %v1860
      %v1862 = vrcp.pop %v1293
      %v1863 = vmul.f32 %v1293, %v1862
      %v1864 = vsub.f32 1.0, %v1863
      %v1865 = vmul.f32 %v1862, %v1864
      %v1866 = vadd.f32 %v1862, %v1865
      %vm1867 = vweird.f32 %v1293
      %vm1868 = vweird.f32 %v1862
      %vm1869 = vmor %vm1867, %vm1868
      %v1870 = vsel %vm1869, %v1862, %v1866
      %v1871 = vand.u32 2147483647, %v1293
      %vm1872 = vcmp.eq.f32.partialorder %v1871, 8.507059e+37
      %v1873 = vand.u32 %v1293, 2147483648
      %v1874 = vor.u32 1.1754944e-38, %v1873
      %v1875 = vsel %vm1872, %v1874, %v1870
      %v1876 = vmul.f32 %v1165, %v1875
      %v1877 = vrcp.pop %v1295
      %v1878 = vmul.f32 %v1295, %v1877
      %v1879 = vsub.f32 1.0, %v1878
      %v1880 = vmul.f32 %v1877, %v1879
      %v1881 = vadd.f32 %v1877, %v1880
      %vm1882 = vweird.f32 %v1295
      %vm1883 = vweird.f32 %v1877
      %vm1884 = vmor %vm1882, %vm1883
      %v1885 = vsel %vm1884, %v1877, %v1881
      %v1886 = vand.u32 2147483647, %v1295
      %vm1887 = vcmp.eq.f32.partialorder %v1886, 8.507059e+37
      %v1888 = vand.u32 %v1295, 2147483648
      %v1889 = vor.u32 1.1754944e-38, %v1888
      %v1890 = vsel %vm1887, %v1889, %v1885
      %v1891 = vmul.f32 %v1167, %v1890
      %v1892 = vrcp.pop %v1297
      %v1893 = vmul.f32 %v1297, %v1892
      %v1894 = vsub.f32 1.0, %v1893
      %v1895 = vmul.f32 %v1892, %v1894
      %v1896 = vadd.f32 %v1892, %v1895
      %vm1897 = vweird.f32 %v1297
      %vm1898 = vweird.f32 %v1892
      %vm1899 = vmor %vm1897, %vm1898
      %v1900 = vsel %vm1899, %v1892, %v1896
      %v1901 = vand.u32 2147483647, %v1297
      %vm1902 = vcmp.eq.f32.partialorder %v1901, 8.507059e+37
      %v1903 = vand.u32 %v1297, 2147483648
      %v1904 = vor.u32 1.1754944e-38, %v1903
      %v1905 = vsel %vm1902, %v1904, %v1900
      %v1906 = vmul.f32 %v1169, %v1905
      %v1907 = vrcp.pop %v1299
      %v1908 = vmul.f32 %v1299, %v1907
      %v1909 = vsub.f32 1.0, %v1908
      %v1910 = vmul.f32 %v1907, %v1909
      %v1911 = vadd.f32 %v1907, %v1910
      %vm1912 = vweird.f32 %v1299
      %vm1913 = vweird.f32 %v1907
      %vm1914 = vmor %vm1912, %vm1913
      %v1915 = vsel %vm1914, %v1907, %v1911
      %v1916 = vand.u32 2147483647, %v1299
      %vm1917 = vcmp.eq.f32.partialorder %v1916, 8.507059e+37
      %v1918 = vand.u32 %v1299, 2147483648
      %v1919 = vor.u32 1.1754944e-38, %v1918
      %v1920 = vsel %vm1917, %v1919, %v1915
      %v1921 = vmul.f32 %v1171, %v1920
      %v1922 = vrcp.pop %v1301
      %v1923 = vmul.f32 %v1301, %v1922
      %v1924 = vsub.f32 1.0, %v1923
      %v1925 = vmul.f32 %v1922, %v1924
      %v1926 = vadd.f32 %v1922, %v1925
      %vm1927 = vweird.f32 %v1301
      %vm1928 = vweird.f32 %v1922
      %vm1929 = vmor %vm1927, %vm1928
      %v1930 = vsel %vm1929, %v1922, %v1926
      %v1931 = vand.u32 2147483647, %v1301
      %vm1932 = vcmp.eq.f32.partialorder %v1931, 8.507059e+37
      %v1933 = vand.u32 %v1301, 2147483648
      %v1934 = vor.u32 1.1754944e-38, %v1933
      %v1935 = vsel %vm1932, %v1934, %v1930
      %v1936 = vmul.f32 %v1173, %v1935
      %v1937 = vrcp.pop %v1303
      %v1938 = vmul.f32 %v1303, %v1937
      %v1939 = vsub.f32 1.0, %v1938
      %v1940 = vmul.f32 %v1937, %v1939
      %v1941 = vadd.f32 %v1937, %v1940
      %vm1942 = vweird.f32 %v1303
      %vm1943 = vweird.f32 %v1937
      %vm1944 = vmor %vm1942, %vm1943
      %v1945 = vsel %vm1944, %v1937, %v1941
      %v1946 = vand.u32 2147483647, %v1303
      %vm1947 = vcmp.eq.f32.partialorder %v1946, 8.507059e+37
      %v1948 = vand.u32 %v1303, 2147483648
      %v1949 = vor.u32 1.1754944e-38, %v1948
      %v1950 = vsel %vm1947, %v1949, %v1945
      %v1951 = vmul.f32 %v1175, %v1950
      %v1952 = vrcp.pop %v1305
      %v1953 = vmul.f32 %v1305, %v1952
      %v1954 = vsub.f32 1.0, %v1953
      %v1955 = vmul.f32 %v1952, %v1954
      %v1956 = vadd.f32 %v1952, %v1955
      %vm1957 = vweird.f32 %v1305
      %vm1958 = vweird.f32 %v1952
      %vm1959 = vmor %vm1957, %vm1958
      %v1960 = vsel %vm1959, %v1952, %v1956
      %v1961 = vand.u32 2147483647, %v1305
      %vm1962 = vcmp.eq.f32.partialorder %v1961, 8.507059e+37
      %v1963 = vand.u32 %v1305, 2147483648
      %v1964 = vor.u32 1.1754944e-38, %v1963
      %v1965 = vsel %vm1962, %v1964, %v1960
      %v1966 = vmul.f32 %v1177, %v1965
      %v1967 = vrcp.pop %v1307
      %v1968 = vmul.f32 %v1307, %v1967
      %v1969 = vsub.f32 1.0, %v1968
      %v1970 = vmul.f32 %v1967, %v1969
      %v1971 = vadd.f32 %v1967, %v1970
      %vm1972 = vweird.f32 %v1307
      %vm1973 = vweird.f32 %v1967
      %vm1974 = vmor %vm1972, %vm1973
      %v1975 = vsel %vm1974, %v1967, %v1971
      %v1976 = vand.u32 2147483647, %v1307
      %vm1977 = vcmp.eq.f32.partialorder %v1976, 8.507059e+37
      %v1978 = vand.u32 %v1307, 2147483648
      %v1979 = vor.u32 1.1754944e-38, %v1978
      %v1980 = vsel %vm1977, %v1979, %v1975
      %v1981 = vmul.f32 %v1179, %v1980
      %v1982 = vrcp.pop %v1309
      %v1983 = vmul.f32 %v1309, %v1982
      %v1984 = vsub.f32 1.0, %v1983
      %v1985 = vmul.f32 %v1982, %v1984
      %v1986 = vadd.f32 %v1982, %v1985
      %vm1987 = vweird.f32 %v1309
      %vm1988 = vweird.f32 %v1982
      %vm1989 = vmor %vm1987, %vm1988
      %v1990 = vsel %vm1989, %v1982, %v1986
      %v1991 = vand.u32 2147483647, %v1309
      %vm1992 = vcmp.eq.f32.partialorder %v1991, 8.507059e+37
      %v1993 = vand.u32 %v1309, 2147483648
      %v1994 = vor.u32 1.1754944e-38, %v1993
      %v1995 = vsel %vm1992, %v1994, %v1990
      %v1996 = vmul.f32 %v1181, %v1995
      %v1997 = vrcp.pop %v1311
      %v1998 = vmul.f32 %v1311, %v1997
      %v1999 = vsub.f32 1.0, %v1998
      %v2000 = vmul.f32 %v1997, %v1999
      %v2001 = vadd.f32 %v1997, %v2000
      %vm2002 = vweird.f32 %v1311
      %vm2003 = vweird.f32 %v1997
      %vm2004 = vmor %vm2002, %vm2003
      %v2005 = vsel %vm2004, %v1997, %v2001
      %v2006 = vand.u32 2147483647, %v1311
      %vm2007 = vcmp.eq.f32.partialorder %v2006, 8.507059e+37
      %v2008 = vand.u32 %v1311, 2147483648
      %v2009 = vor.u32 1.1754944e-38, %v2008
      %v2010 = vsel %vm2007, %v2009, %v2005
      %v2011 = vmul.f32 %v1183, %v2010
      %v2012 = vrcp.pop %v1313
      %v2013 = vmul.f32 %v1313, %v2012
      %v2014 = vsub.f32 1.0, %v2013
      %v2015 = vmul.f32 %v2012, %v2014
      %v2016 = vadd.f32 %v2012, %v2015
      %vm2017 = vweird.f32 %v1313
      %vm2018 = vweird.f32 %v2012
      %vm2019 = vmor %vm2017, %vm2018
      %v2020 = vsel %vm2019, %v2012, %v2016
      %v2021 = vand.u32 2147483647, %v1313
      %vm2022 = vcmp.eq.f32.partialorder %v2021, 8.507059e+37
      %v2023 = vand.u32 %v1313, 2147483648
      %v2024 = vor.u32 1.1754944e-38, %v2023
      %v2025 = vsel %vm2022, %v2024, %v2020
      %v2026 = vmul.f32 %v1185, %v2025
      %v2027 = vrcp.pop %v1315
      %v2028 = vmul.f32 %v1315, %v2027
      %v2029 = vsub.f32 1.0, %v2028
      %v2030 = vmul.f32 %v2027, %v2029
      %v2031 = vadd.f32 %v2027, %v2030
      %vm2032 = vweird.f32 %v1315
      %vm2033 = vweird.f32 %v2027
      %vm2034 = vmor %vm2032, %vm2033
      %v2035 = vsel %vm2034, %v2027, %v2031
      %v2036 = vand.u32 2147483647, %v1315
      %vm2037 = vcmp.eq.f32.partialorder %v2036, 8.507059e+37
      %v2038 = vand.u32 %v1315, 2147483648
      %v2039 = vor.u32 1.1754944e-38, %v2038
      %v2040 = vsel %vm2037, %v2039, %v2035
      %v2041 = vmul.f32 %v1187, %v2040
      %v2042 = vrcp.pop %v1317
      %v2043 = vmul.f32 %v1317, %v2042
      %v2044 = vsub.f32 1.0, %v2043
      %v2045 = vmul.f32 %v2042, %v2044
      %v2046 = vadd.f32 %v2042, %v2045
      %vm2047 = vweird.f32 %v1317
      %vm2048 = vweird.f32 %v2042
      %vm2049 = vmor %vm2047, %vm2048
      %v2050 = vsel %vm2049, %v2042, %v2046
      %v2051 = vand.u32 2147483647, %v1317
      %vm2052 = vcmp.eq.f32.partialorder %v2051, 8.507059e+37
      %v2053 = vand.u32 %v1317, 2147483648
      %v2054 = vor.u32 1.1754944e-38, %v2053
      %v2055 = vsel %vm2052, %v2054, %v2050
      %v2056 = vmul.f32 %v1189, %v2055
      %v2057 = vrcp.pop %v1319
      %v2058 = vmul.f32 %v1319, %v2057
      %v2059 = vsub.f32 1.0, %v2058
      %v2060 = vmul.f32 %v2057, %v2059
      %v2061 = vadd.f32 %v2057, %v2060
      %vm2062 = vweird.f32 %v1319
      %vm2063 = vweird.f32 %v2057
      %vm2064 = vmor %vm2062, %vm2063
      %v2065 = vsel %vm2064, %v2057, %v2061
      %v2066 = vand.u32 2147483647, %v1319
      %vm2067 = vcmp.eq.f32.partialorder %v2066, 8.507059e+37
      %v2068 = vand.u32 %v1319, 2147483648
      %v2069 = vor.u32 1.1754944e-38, %v2068
      %v2070 = vsel %vm2067, %v2069, %v2065
      %v2071 = vmul.f32 %v1191, %v2070
      %v2072 = vrcp.pop %v1321
      %v2073 = vmul.f32 %v1321, %v2072
      %v2074 = vsub.f32 1.0, %v2073
      %v2075 = vmul.f32 %v2072, %v2074
      %v2076 = vadd.f32 %v2072, %v2075
      %vm2077 = vweird.f32 %v1321
      %vm2078 = vweird.f32 %v2072
      %vm2079 = vmor %vm2077, %vm2078
      %v2080 = vsel %vm2079, %v2072, %v2076
      %v2081 = vand.u32 2147483647, %v1321
      %vm2082 = vcmp.eq.f32.partialorder %v2081, 8.507059e+37
      %v2083 = vand.u32 %v1321, 2147483648
      %v2084 = vor.u32 1.1754944e-38, %v2083
      %v2085 = vsel %vm2082, %v2084, %v2080
      %v2086 = vmul.f32 %v1193, %v2085
      %v2087 = vrcp.pop %v1323
      %v2088 = vmul.f32 %v1323, %v2087
      %v2089 = vsub.f32 1.0, %v2088
      %v2090 = vmul.f32 %v2087, %v2089
      %v2091 = vadd.f32 %v2087, %v2090
      %vm2092 = vweird.f32 %v1323
      %vm2093 = vweird.f32 %v2087
      %vm2094 = vmor %vm2092, %vm2093
      %v2095 = vsel %vm2094, %v2087, %v2091
      %v2096 = vand.u32 2147483647, %v1323
      %vm2097 = vcmp.eq.f32.partialorder %v2096, 8.507059e+37
      %v2098 = vand.u32 %v1323, 2147483648
      %v2099 = vor.u32 1.1754944e-38, %v2098
      %v2100 = vsel %vm2097, %v2099, %v2095
      %v2101 = vmul.f32 %v1195, %v2100
      %v2102 = vrcp.pop %v1325
      %v2103 = vmul.f32 %v1325, %v2102
      %v2104 = vsub.f32 1.0, %v2103
      %v2105 = vmul.f32 %v2102, %v2104
      %v2106 = vadd.f32 %v2102, %v2105
      %vm2107 = vweird.f32 %v1325
      %vm2108 = vweird.f32 %v2102
      %vm2109 = vmor %vm2107, %vm2108
      %v2110 = vsel %vm2109, %v2102, %v2106
      %v2111 = vand.u32 2147483647, %v1325
      %vm2112 = vcmp.eq.f32.partialorder %v2111, 8.507059e+37
      %v2113 = vand.u32 %v1325, 2147483648
      %v2114 = vor.u32 1.1754944e-38, %v2113
      %v2115 = vsel %vm2112, %v2114, %v2110
      %v2116 = vmul.f32 %v1197, %v2115
      %v2117 = vrcp.pop %v1327
      %v2118 = vmul.f32 %v1327, %v2117
      %v2119 = vsub.f32 1.0, %v2118
      %v2120 = vmul.f32 %v2117, %v2119
      %v2121 = vadd.f32 %v2117, %v2120
      %vm2122 = vweird.f32 %v1327
      %vm2123 = vweird.f32 %v2117
      %vm2124 = vmor %vm2122, %vm2123
      %v2125 = vsel %vm2124, %v2117, %v2121
      %v2126 = vand.u32 2147483647, %v1327
      %vm2127 = vcmp.eq.f32.partialorder %v2126, 8.507059e+37
      %v2128 = vand.u32 %v1327, 2147483648
      %v2129 = vor.u32 1.1754944e-38, %v2128
      %v2130 = vsel %vm2127, %v2129, %v2125
      %v2131 = vmul.f32 %v1199, %v2130
      %v2132 = vrcp.pop %v1329
      %v2133 = vmul.f32 %v1329, %v2132
      %v2134 = vsub.f32 1.0, %v2133
      %v2135 = vmul.f32 %v2132, %v2134
      %v2136 = vadd.f32 %v2132, %v2135
      %vm2137 = vweird.f32 %v1329
      %vm2138 = vweird.f32 %v2132
      %vm2139 = vmor %vm2137, %vm2138
      %v2140 = vsel %vm2139, %v2132, %v2136
      %v2141 = vand.u32 2147483647, %v1329
      %vm2142 = vcmp.eq.f32.partialorder %v2141, 8.507059e+37
      %v2143 = vand.u32 %v1329, 2147483648
      %v2144 = vor.u32 1.1754944e-38, %v2143
      %v2145 = vsel %vm2142, %v2144, %v2140
      %v2146 = vmul.f32 %v1201, %v2145
      %v2147 = vrcp.pop %v1331
      %v2148 = vmul.f32 %v1331, %v2147
      %v2149 = vsub.f32 1.0, %v2148
      %v2150 = vmul.f32 %v2147, %v2149
      %v2151 = vadd.f32 %v2147, %v2150
      %vm2152 = vweird.f32 %v1331
      %vm2153 = vweird.f32 %v2147
      %vm2154 = vmor %vm2152, %vm2153
      %v2155 = vsel %vm2154, %v2147, %v2151
      %v2156 = vand.u32 2147483647, %v1331
      %vm2157 = vcmp.eq.f32.partialorder %v2156, 8.507059e+37
      %v2158 = vand.u32 %v1331, 2147483648
      %v2159 = vor.u32 1.1754944e-38, %v2158
      %v2160 = vsel %vm2157, %v2159, %v2155
      %v2161 = vmul.f32 %v1203, %v2160
      %v2162 = vrcp.pop %v1333
      %v2163 = vmul.f32 %v1333, %v2162
      %v2164 = vsub.f32 1.0, %v2163
      %v2165 = vmul.f32 %v2162, %v2164
      %v2166 = vadd.f32 %v2162, %v2165
      %vm2167 = vweird.f32 %v1333
      %vm2168 = vweird.f32 %v2162
      %vm2169 = vmor %vm2167, %vm2168
      %v2170 = vsel %vm2169, %v2162, %v2166
      %v2171 = vand.u32 2147483647, %v1333
      %vm2172 = vcmp.eq.f32.partialorder %v2171, 8.507059e+37
      %v2173 = vand.u32 %v1333, 2147483648
      %v2174 = vor.u32 1.1754944e-38, %v2173
      %v2175 = vsel %vm2172, %v2174, %v2170
      %v2176 = vmul.f32 %v1205, %v2175
      %v2177 = vrcp.pop %v1335
      %v2178 = vmul.f32 %v1335, %v2177
      %v2179 = vsub.f32 1.0, %v2178
      %v2180 = vmul.f32 %v2177, %v2179
      %v2181 = vadd.f32 %v2177, %v2180
      %vm2182 = vweird.f32 %v1335
      %vm2183 = vweird.f32 %v2177
      %vm2184 = vmor %vm2182, %vm2183
      %v2185 = vsel %vm2184, %v2177, %v2181
      %v2186 = vand.u32 2147483647, %v1335
      %vm2187 = vcmp.eq.f32.partialorder %v2186, 8.507059e+37
      %v2188 = vand.u32 %v1335, 2147483648
      %v2189 = vor.u32 1.1754944e-38, %v2188
      %v2190 = vsel %vm2187, %v2189, %v2185
      %v2191 = vmul.f32 %v1207, %v2190
      %v2192 = vrcp.pop %v1337
      %v2193 = vmul.f32 %v1337, %v2192
      %v2194 = vsub.f32 1.0, %v2193
      %v2195 = vmul.f32 %v2192, %v2194
      %v2196 = vadd.f32 %v2192, %v2195
      %vm2197 = vweird.f32 %v1337
      %vm2198 = vweird.f32 %v2192
      %vm2199 = vmor %vm2197, %vm2198
      %v2200 = vsel %vm2199, %v2192, %v2196
      %v2201 = vand.u32 2147483647, %v1337
      %vm2202 = vcmp.eq.f32.partialorder %v2201, 8.507059e+37
      %v2203 = vand.u32 %v1337, 2147483648
      %v2204 = vor.u32 1.1754944e-38, %v2203
      %v2205 = vsel %vm2202, %v2204, %v2200
      %v2206 = vmul.f32 %v1209, %v2205
      %v2207 = vrcp.pop %v1339
      %v2208 = vmul.f32 %v1339, %v2207
      %v2209 = vsub.f32 1.0, %v2208
      %v2210 = vmul.f32 %v2207, %v2209
      %v2211 = vadd.f32 %v2207, %v2210
      %vm2212 = vweird.f32 %v1339
      %vm2213 = vweird.f32 %v2207
      %vm2214 = vmor %vm2212, %vm2213
      %v2215 = vsel %vm2214, %v2207, %v2211
      %v2216 = vand.u32 2147483647, %v1339
      %vm2217 = vcmp.eq.f32.partialorder %v2216, 8.507059e+37
      %v2218 = vand.u32 %v1339, 2147483648
      %v2219 = vor.u32 1.1754944e-38, %v2218
      %v2220 = vsel %vm2217, %v2219, %v2215
      %v2221 = vmul.f32 %v1211, %v2220
      %v2222 = vrcp.pop %v1341
      %v2223 = vmul.f32 %v1341, %v2222
      %v2224 = vsub.f32 1.0, %v2223
      %v2225 = vmul.f32 %v2222, %v2224
      %v2226 = vadd.f32 %v2222, %v2225
      %vm2227 = vweird.f32 %v1341
      %vm2228 = vweird.f32 %v2222
      %vm2229 = vmor %vm2227, %vm2228
      %v2230 = vsel %vm2229, %v2222, %v2226
      %v2231 = vand.u32 2147483647, %v1341
      %vm2232 = vcmp.eq.f32.partialorder %v2231, 8.507059e+37
      %v2233 = vand.u32 %v1341, 2147483648
      %v2234 = vor.u32 1.1754944e-38, %v2233
      %v2235 = vsel %vm2232, %v2234, %v2230
      %v2236 = vmul.f32 %v1213, %v2235
      %v2237 = vrcp.pop %v1343
      %v2238 = vmul.f32 %v1343, %v2237
      %v2239 = vsub.f32 1.0, %v2238
      %v2240 = vmul.f32 %v2237, %v2239
      %v2241 = vadd.f32 %v2237, %v2240
      %vm2242 = vweird.f32 %v1343
      %vm2243 = vweird.f32 %v2237
      %vm2244 = vmor %vm2242, %vm2243
      %v2245 = vsel %vm2244, %v2237, %v2241
      %v2246 = vand.u32 2147483647, %v1343
      %vm2247 = vcmp.eq.f32.partialorder %v2246, 8.507059e+37
      %v2248 = vand.u32 %v1343, 2147483648
      %v2249 = vor.u32 1.1754944e-38, %v2248
      %v2250 = vsel %vm2247, %v2249, %v2245
      %v2251 = vmul.f32 %v1215, %v2250
      %v2252 = vrcp.pop %v1345
      %v2253 = vmul.f32 %v1345, %v2252
      %v2254 = vsub.f32 1.0, %v2253
      %v2255 = vmul.f32 %v2252, %v2254
      %v2256 = vadd.f32 %v2252, %v2255
      %vm2257 = vweird.f32 %v1345
      %vm2258 = vweird.f32 %v2252
      %vm2259 = vmor %vm2257, %vm2258
      %v2260 = vsel %vm2259, %v2252, %v2256
      %v2261 = vand.u32 2147483647, %v1345
      %vm2262 = vcmp.eq.f32.partialorder %v2261, 8.507059e+37
      %v2263 = vand.u32 %v1345, 2147483648
      %v2264 = vor.u32 1.1754944e-38, %v2263
      %v2265 = vsel %vm2262, %v2264, %v2260
      %v2266 = vmul.f32 %v1217, %v2265
      %v2267 = vrcp.pop %v1347
      %v2268 = vmul.f32 %v1347, %v2267
      %v2269 = vsub.f32 1.0, %v2268
      %v2270 = vmul.f32 %v2267, %v2269
      %v2271 = vadd.f32 %v2267, %v2270
      %vm2272 = vweird.f32 %v1347
      %vm2273 = vweird.f32 %v2267
      %vm2274 = vmor %vm2272, %vm2273
      %v2275 = vsel %vm2274, %v2267, %v2271
      %v2276 = vand.u32 2147483647, %v1347
      %vm2277 = vcmp.eq.f32.partialorder %v2276, 8.507059e+37
      %v2278 = vand.u32 %v1347, 2147483648
      %v2279 = vor.u32 1.1754944e-38, %v2278
      %v2280 = vsel %vm2277, %v2279, %v2275
      %v2281 = vmul.f32 %v1219, %v2280
      %v2282 = vrcp.pop %v1349
      %v2283 = vmul.f32 %v1349, %v2282
      %v2284 = vsub.f32 1.0, %v2283
      %v2285 = vmul.f32 %v2282, %v2284
      %v2286 = vadd.f32 %v2282, %v2285
      %vm2287 = vweird.f32 %v1349
      %vm2288 = vweird.f32 %v2282
      %vm2289 = vmor %vm2287, %vm2288
      %v2290 = vsel %vm2289, %v2282, %v2286
      %v2291 = vand.u32 2147483647, %v1349
      %vm2292 = vcmp.eq.f32.partialorder %v2291, 8.507059e+37
      %v2293 = vand.u32 %v1349, 2147483648
      %v2294 = vor.u32 1.1754944e-38, %v2293
      %v2295 = vsel %vm2292, %v2294, %v2290
      %v2296 = vmul.f32 %v1221, %v2295
      %v2297 = vrcp.pop %v1351
      %v2298 = vmul.f32 %v1351, %v2297
      %v2299 = vsub.f32 1.0, %v2298
      %v2300 = vmul.f32 %v2297, %v2299
      %v2301 = vadd.f32 %v2297, %v2300
      %vm2302 = vweird.f32 %v1351
      %vm2303 = vweird.f32 %v2297
      %vm2304 = vmor %vm2302, %vm2303
      %v2305 = vsel %vm2304, %v2297, %v2301
      %v2306 = vand.u32 2147483647, %v1351
      %vm2307 = vcmp.eq.f32.partialorder %v2306, 8.507059e+37
      %v2308 = vand.u32 %v1351, 2147483648
      %v2309 = vor.u32 1.1754944e-38, %v2308
      %v2310 = vsel %vm2307, %v2309, %v2305
      %v2311 = vmul.f32 %v1223, %v2310
      %vm2312 = vcmask 31744
      %2313 = vst.msk [vmem:[%s199] sm:$0xff] %vm2312, %v1366
      %2314 = vst.msk [vmem:[%s199 + $0x8] sm:$0xff] %vm2312, %v1381
      %2315 = vst.msk [vmem:[%s199 + $0x10] sm:$0xff] %vm2312, %v1396
      %2316 = vst.msk [vmem:[%s199 + $0x18] sm:$0xff] %vm2312, %v1411
      %2317 = vst.msk [vmem:[%s199 + $0x20] sm:$0xff] %vm2312, %v1426
      %2318 = vst.msk [vmem:[%s199 + $0x28] sm:$0xff] %vm2312, %v1441
      %2319 = vst.msk [vmem:[%s199 + $0x30] sm:$0xff] %vm2312, %v1456
      %2320 = vst.msk [vmem:[%s199 + $0x38] sm:$0xff] %vm2312, %v1471
      %2321 = vst.msk [vmem:[%s199 + $0x40] sm:$0xff] %vm2312, %v1486
      %2322 = vst.msk [vmem:[%s199 + $0x48] sm:$0xff] %vm2312, %v1501
      %2323 = vst.msk [vmem:[%s199 + $0x50] sm:$0xff] %vm2312, %v1516
      %2324 = vst.msk [vmem:[%s199 + $0x58] sm:$0xff] %vm2312, %v1531
      %2325 = vst.msk [vmem:[%s199 + $0x60] sm:$0xff] %vm2312, %v1546
      %2326 = vst.msk [vmem:[%s199 + $0x68] sm:$0xff] %vm2312, %v1561
      %2327 = vst.msk [vmem:[%s199 + $0x70] sm:$0xff] %vm2312, %v1576
      %2328 = vst.msk [vmem:[%s199 + $0x78] sm:$0xff] %vm2312, %v1591
      %2329 = vst.msk [vmem:[%s199 + $0x80] sm:$0xff] %vm2312, %v1606
      %2330 = vst.msk [vmem:[%s199 + $0x88] sm:$0xff] %vm2312, %v1621
      %2331 = vst.msk [vmem:[%s199 + $0x90] sm:$0xff] %vm2312, %v1636
      %2332 = vst.msk [vmem:[%s199 + $0x98] sm:$0xff] %vm2312, %v1651
      %2333 = vst.msk [vmem:[%s199 + $0xa0] sm:$0xff] %vm2312, %v1666
      %2334 = vst.msk [vmem:[%s199 + $0xa8] sm:$0xff] %vm2312, %v1681
      %2335 = vst.msk [vmem:[%s199 + $0xb0] sm:$0xff] %vm2312, %v1696
      %2336 = vst.msk [vmem:[%s199 + $0xb8] sm:$0xff] %vm2312, %v1711
      %2337 = vst.msk [vmem:[%s199 + $0xc0] sm:$0xff] %vm2312, %v1726
      %2338 = vst.msk [vmem:[%s199 + $0xc8] sm:$0xff] %vm2312, %v1741
      %2339 = vst.msk [vmem:[%s199 + $0xd0] sm:$0xff] %vm2312, %v1756
      %2340 = vst.msk [vmem:[%s199 + $0xd8] sm:$0xff] %vm2312, %v1771
      %2341 = vst.msk [vmem:[%s199 + $0xe0] sm:$0xff] %vm2312, %v1786
      %2342 = vst.msk [vmem:[%s199 + $0xe8] sm:$0xff] %vm2312, %v1801
      %2343 = vst.msk [vmem:[%s199 + $0xf0] sm:$0xff] %vm2312, %v1816
      %2344 = vst.msk [vmem:[%s199 + $0xf8] sm:$0xff] %vm2312, %v1831
      %2345 = vst.msk [vmem:[%s199 + $0x100] sm:$0xff] %vm2312, %v1846
      %2346 = vst.msk [vmem:[%s199 + $0x108] sm:$0xff] %vm2312, %v1861
      %2347 = vst.msk [vmem:[%s199 + $0x110] sm:$0xff] %vm2312, %v1876
      %2348 = vst.msk [vmem:[%s199 + $0x118] sm:$0xff] %vm2312, %v1891
      %2349 = vst.msk [vmem:[%s199 + $0x120] sm:$0xff] %vm2312, %v1906
      %2350 = vst.msk [vmem:[%s199 + $0x128] sm:$0xff] %vm2312, %v1921
      %2351 = vst.msk [vmem:[%s199 + $0x130] sm:$0xff] %vm2312, %v1936
      %2352 = vst.msk [vmem:[%s199 + $0x138] sm:$0xff] %vm2312, %v1951
      %2353 = vst.msk [vmem:[%s199 + $0x140] sm:$0xff] %vm2312, %v1966
      %2354 = vst.msk [vmem:[%s199 + $0x148] sm:$0xff] %vm2312, %v1981
      %2355 = vst.msk [vmem:[%s199 + $0x150] sm:$0xff] %vm2312, %v1996
      %2356 = vst.msk [vmem:[%s199 + $0x158] sm:$0xff] %vm2312, %v2011
      %2357 = vst.msk [vmem:[%s199 + $0x160] sm:$0xff] %vm2312, %v2026
      %2358 = vst.msk [vmem:[%s199 + $0x168] sm:$0xff] %vm2312, %v2041
      %2359 = vst.msk [vmem:[%s199 + $0x170] sm:$0xff] %vm2312, %v2056
      %2360 = vst.msk [vmem:[%s199 + $0x178] sm:$0xff] %vm2312, %v2071
      %2361 = vst.msk [vmem:[%s199 + $0x180] sm:$0xff] %vm2312, %v2086
      %2362 = vst.msk [vmem:[%s199 + $0x188] sm:$0xff] %vm2312, %v2101
      %2363 = vst.msk [vmem:[%s199 + $0x190] sm:$0xff] %vm2312, %v2116
      %2364 = vst.msk [vmem:[%s199 + $0x198] sm:$0xff] %vm2312, %v2131
      %2365 = vst.msk [vmem:[%s199 + $0x1a0] sm:$0xff] %vm2312, %v2146
      %2366 = vst.msk [vmem:[%s199 + $0x1a8] sm:$0xff] %vm2312, %v2161
      %2367 = vst.msk [vmem:[%s199 + $0x1b0] sm:$0xff] %vm2312, %v2176
      %2368 = vst.msk [vmem:[%s199 + $0x1b8] sm:$0xff] %vm2312, %v2191
      %2369 = vst.msk [vmem:[%s199 + $0x1c0] sm:$0xff] %vm2312, %v2206
      %2370 = vst.msk [vmem:[%s199 + $0x1c8] sm:$0xff] %vm2312, %v2221
      %2371 = vst.msk [vmem:[%s199 + $0x1d0] sm:$0xff] %vm2312, %v2236
      %2372 = vst.msk [vmem:[%s199 + $0x1d8] sm:$0xff] %vm2312, %v2251
      %2373 = vst.msk [vmem:[%s199 + $0x1e0] sm:$0xff] %vm2312, %v2266
      %2374 = vst.msk [vmem:[%s199 + $0x1e8] sm:$0xff] %vm2312, %v2281
      %2375 = vst.msk [vmem:[%s199 + $0x1f0] sm:$0xff] %vm2312, %v2296
      %2376 = vst.msk [vmem:[%s199 + $0x1f8] sm:$0xff] %vm2312, %v2311
      %s2377 = smul.u32 64, %s15
      %p2378 = scmp.lt.s32.totalorder %s2377, 127
      %s2379 = scalar_select %p2378, %s2377, 127
      %s2380 = smul.addr %s2379, 8
      %s2381 = scalar_lea.vmem %s4, %s2380
      // Predicated region
      $region37: #{policy_net_forward.1} parent=35 // pred_check
        %p2382 = pneg %p122
      $region38: #{policy_net_forward.1} parent=35 // pred_check_branch
        %2384 = sbr.rel (%p2382) target = $region40
      $region39: #{policy_net_forward.1} parent=35 // pred_region
        %s2385 = smul.u32 64, %s15
      $region40: #{policy_net_forward.1} parent=35 // pred_fallthru
        _
    $region36: #{policy_net_forward.1} parent=5 // pred_fallthru
      _
    %p2386 = scmp.le.s32.totalorder 2, %s10
    // Predicated region
    $region41: #{policy_net_forward.1} parent=5 // pred_check
      %p2387 = pneg %p2386
    $region42: #{policy_net_forward.1} parent=5 // pred_check_branch
      %2389 = sbr.rel (%p2387) target = $region44
    $region43: #{policy_net_forward.1} parent=5 // pred_region
      %s2390 = ssub.s32 %s10, 2
      // Predicated region
      $region45: #{policy_net_forward.1} parent=43 // pred_check
        %p2391 = pneg %p128
      $region46: #{policy_net_forward.1} parent=43 // pred_check_branch
        %2393 = sbr.rel (%p2391) target = $region48
      $region47: #{policy_net_forward.1} parent=43 // pred_region
        %s2394 = smul.u32 64, %s16
        %p2395 = scmp.lt.s32.totalorder %s2394, 127
        %s2396 = scalar_select %p2395, %s2394, 127
        %s2397 = smul.addr %s2396, 8
        %s2398 = scalar_lea.vmem %s4, %s2397
      $region48: #{policy_net_forward.1} parent=43 // pred_fallthru
        _
    $region44: #{policy_net_forward.1} parent=5 // pred_fallthru
      _
  $region6: #{policy_net_forward.1} parent=0 // loop_footer
    %s14 = sadd.s32 1, %s10
  $region7: #{policy_net_forward.1} parent=0 // loop_footer_branch
    %9 = sbr.rel target = $region3
  $region8: #{policy_net_forward.1} parent=0 // loop_exit
    _

</llo_original>
